<compile_context>
chip_gen: v7x
topology: tpu7x:2x2x1
jax: 0.10.0
libtpu: 0.0.40
codegen_flags: <defaults>
</compile_context>

<pallas_src>
from functools import partial

import jax
import jax.numpy as jnp
from jax import lax
from jax.experimental import pallas as pl
from jax.experimental.pallas import tpu as pltpu

F32 = jnp.float32
BF16 = jnp.bfloat16
BN_EPS = 1e-5
NEG_INF = float(jnp.finfo(jnp.float32).min)
BLOCKS_PER_STEP = 2                      # BasicBlocks fused per grid step
VMEM_LIMIT = 32 * 1024 * 1024            # explicit scoped-VMEM budget (all gens)


# ----------------------------------------------------------------------------
# In-kernel helpers
# ----------------------------------------------------------------------------
def _bn_fold(y, gamma, beta, valid, inv_n):
    """BatchNorm1d, training-mode batch stats, (C, Np) layout with pad lanes
    excluded via `valid` and the true element count (inv_n = 1/count).
    One-pass E[x^2]-E[x]^2 (clamped at 0).  TODO(synk): switch to a second pass
    over the VMEM-resident data if large-mean precision ever matters."""
    yv = y * valid
    s = jnp.sum(yv, axis=1, keepdims=True)
    ss = jnp.sum(yv * yv, axis=1, keepdims=True)
    m = s * inv_n
    v = jnp.maximum(ss * inv_n - m * m, 0.0)
    scale = gamma * lax.rsqrt(v + BN_EPS)
    return y * scale + (beta - m * scale)


# ----------------------------------------------------------------------------
# Kernels
# ----------------------------------------------------------------------------
def _stem_kernel(xph_ref, w_ref, prm_ref, msk_ref, o_ref, *, inv_n):
    """Fused stem: conv1(k7,s2,p3) (x) grouped-1x1 conv2 folded into per-tap MXU
    dots, + bias, ReLU, BatchNorm1d (batch stats), MaxPool1d(3,2,1).

    xph_ref: (4, nchns, Np)  stride-4 phase slabs of the raw input (lane=b*L2+p)
    w_ref  : (7, rc, nchns)  folded conv1*conv2 weight per conv tap
    prm_ref: (rc, 3)         packed [bias_eff, bn_gamma, bn_beta]
    msk_ref: (3, Np)         rows [has_left, has_right, valid] (batch/pad masks)
    o_ref  : (rc, Np)        pooled output slab (pad lanes written as 0)
    """
    Np = o_ref.shape[1]
    has_l = msk_ref[0:1, :]
    has_r = msk_ref[1:2, :]
    valid = msk_ref[2:3, :]

    x0 = xph_ref[0]
    x1 = xph_ref[1]
    x2 = xph_ref[2]
    x3 = xph_ref[3]
    # +-1 halos along the pooled-position axis (zero-pad semantics via masks)
    x1m = pltpu.roll(x1, 1, axis=1) * has_l
    x2m = pltpu.roll(x2, 1, axis=1) * has_l
    x3m = pltpu.roll(x3, 1, axis=1) * has_l
    x0p = pltpu.roll(x0, Np - 1, axis=1) * has_r
    x1p = pltpu.roll(x1, Np - 1, axis=1) * has_r

    def tap(k, a):
        # stem stays f32-operand on purpose (see header note on precision)
        return jnp.dot(w_ref[k], a, preferred_element_type=F32)

    # conv output at EVEN positions 2p uses samples 4p-3 .. 4p+3
    h_e = (tap(0, x1m) + tap(1, x2m) + tap(2, x3m) + tap(3, x0)
           + tap(4, x1) + tap(5, x2) + tap(6, x3))
    # conv output at ODD positions 2p+1 uses samples 4p-1 .. 4p+5
    h_o = (tap(0, x3m) + tap(1, x0) + tap(2, x1) + tap(3, x2)
           + tap(4, x3) + tap(5, x0p) + tap(6, x1p))

    bias = prm_ref[:, 0:1]
    gamma = prm_ref[:, 1:2]
    beta = prm_ref[:, 2:3]
    h_e = jnp.maximum(h_e + bias, 0.0)          # ReLU comes BEFORE bn1 in module
    h_o = jnp.maximum(h_o + bias, 0.0)

    # BatchNorm over the full (B, L1) extent == both parities; masked, folded.
    he_v = h_e * valid
    ho_v = h_o * valid
    s = jnp.sum(he_v, axis=1, keepdims=True) + jnp.sum(ho_v, axis=1, keepdims=True)
    ss = (jnp.sum(he_v * he_v, axis=1, keepdims=True)
          + jnp.sum(ho_v * ho_v, axis=1, keepdims=True))
    m = s * inv_n
    v = jnp.maximum(ss * inv_n - m * m, 0.0)
    scale = gamma * lax.rsqrt(v + BN_EPS)
    off = beta - m * scale
    h_e = h_e * scale + off
    h_o = h_o * scale + off

    # MaxPool(3,2,1): out[p] = max(h[2p-1], h[2p], h[2p+1]) = max(h_o[p-1], h_e[p], h_o[p])
    h_prev = pltpu.roll(h_o, 1, axis=1)
    h_prev = jnp.where(has_l > 0.5, h_prev, NEG_INF)
    o_ref[...] = jnp.maximum(jnp.maximum(h_prev, h_e), h_o) * valid


def _resblocks_kernel(x_ref, w_ref, bn_ref, msk_ref, o_ref, *, inv_n,
                      blocks_per_step):
    """One grid step == `blocks_per_step` fully-fused BasicBlocks:
         y   = relu(bn1(conv3(x))) ; out = relu(bn2(conv3(y)) + x)
    The activation lives in the OUTPUT block (constant index_map -> VMEM
    resident across the whole 'arbitrary' axis); only the tiny per-step bf16
    weights / BN params are streamed.

    x_ref  : (rc, Np)                        initial activation (read at step 0)
    w_ref  : (1, bps, 2, 3, rc, rc)  bf16    [block, conv, tap] weight slices
    bn_ref : (1, bps, rc, 4)                 columns [g1, b1, g2, b2]
    msk_ref: (3, Np)                         [has_left, has_right, valid]
    o_ref  : (rc, Np)
    """
    i = pl.program_id(0)

    @pl.when(i == 0)
    def _():
        o_ref[...] = x_ref[...]

    Np = o_ref.shape[1]
    has_l = msk_ref[0:1, :]
    has_r = msk_ref[1:2, :]
    valid = msk_ref[2:3, :]

    x = o_ref[...]
    for j in range(blocks_per_step):                      # static unroll
        def conv3(a, cidx, j=j):
            # k=3, stride 1, zero pad 1: halo via lane rotation + boundary
            # masks; three accumulating per-tap MXU dots (no concat temp).
            # Operands cast to bf16 right before the dot; f32 accumulation.
            a_m1 = (pltpu.roll(a, 1, axis=1) * has_l).astype(BF16)
            a_p1 = (pltpu.roll(a, Np - 1, axis=1) * has_r).astype(BF16)
            out = jnp.dot(w_ref[0, j, cidx, 0], a_m1, preferred_element_type=F32)
            out = out + jnp.dot(w_ref[0, j, cidx, 1], a.astype(BF16),
                                preferred_element_type=F32)
            out = out + jnp.dot(w_ref[0, j, cidx, 2], a_p1,
                                preferred_element_type=F32)
            return out

        g1 = bn_ref[0, j, :, 0:1]
        b1 = bn_ref[0, j, :, 1:2]
        g2 = bn_ref[0, j, :, 2:3]
        b2 = bn_ref[0, j, :, 3:4]
        y = jnp.maximum(_bn_fold(conv3(x, 0), g1, b1, valid, inv_n), 0.0)
        z = _bn_fold(conv3(y, 1), g2, b2, valid, inv_n)
        x = jnp.maximum(z + x, 0.0) * valid               # keep pad lanes at 0

    o_ref[...] = x


# ----------------------------------------------------------------------------
# Parameters (deterministic, synthetic; shapes follow ResEncoder.__init__)
# ----------------------------------------------------------------------------
def init_params(key, nchns, rc, res_layers):
    ks = jax.random.split(key, 4 + 2 * res_layers)
    params = dict(
        conv1_w=0.2 * jax.random.normal(ks[0], (rc, 1, 7), F32),      # Conv1d(1, rc, 7)
        conv1_b=0.1 * jax.random.normal(ks[1], (rc,), F32),
        conv2_w=0.2 * jax.random.normal(ks[2], (rc, nchns, 1), F32),  # grouped 1x1
        conv2_b=0.1 * jax.random.normal(ks[3], (rc,), F32),
        bn1_g=jnp.ones((rc,), F32),
        bn1_b=jnp.zeros((rc,), F32),
        blocks=[],
    )
    for i in range(res_layers):
        params["blocks"].append(dict(
            w1=0.2 * jax.random.normal(ks[4 + 2 * i], (rc, rc, 3), F32),
            w2=0.2 * jax.random.normal(ks[5 + 2 * i], (rc, rc, 3), F32),
            bn1_g=jnp.ones((rc,), F32),
            bn1_b=jnp.zeros((rc,), F32),
            bn2_g=jnp.zeros((rc,), F32),   # zero_init_residual: bn2.weight = 0
            bn2_b=jnp.zeros((rc,), F32),
        ))
    return params


# ----------------------------------------------------------------------------
# One-time parameter / layout glue (hoisted out of the per-call forward)
# ----------------------------------------------------------------------------
def prepare_params(params, B, nchns, L):
    assert L % 4 == 0, "demo assumes L divisible by 4"
    rc = params["conv1_w"].shape[0]
    L2 = L // 4
    N2 = B * L2
    Np = max(128, pl.cdiv(N2, 128) * 128)          # lane-dense padded extent

    # fold conv1*conv2 per tap: wst[k] = w1[:, k:k+1] * w2  -> (7, rc, nchns)
    w1 = params["conv1_w"][:, 0, :]                # (rc, 7)
    w2 = params["conv2_w"][:, :, 0]                # (rc, nchns)
    wst = jnp.stack([w1[:, k:k + 1] * w2 for k in range(7)], axis=0)
    bias_eff = params["conv1_b"] * jnp.sum(w2, axis=1) + params["conv2_b"]
    prm = jnp.stack([bias_eff, params["bn1_g"], params["bn1_b"]], axis=1)  # (rc, 3)

    # batch-boundary / pad masks for the flat (C, B*L2 padded) layout
    lane = jnp.arange(Np, dtype=jnp.int32)
    pos = lane % L2
    in_range = lane < N2
    masks = jnp.stack([((pos != 0) & in_range).astype(F32),
                       ((pos != (L2 - 1)) & in_range).astype(F32),
                       in_range.astype(F32)], axis=0)                     # (3, Np)

    # residual blocks: stack per-step [block, conv, tap] bf16 weights + BN params
    blocks = params["blocks"]
    nblk = len(blocks)
    nsteps = pl.cdiv(nblk, BLOCKS_PER_STEP)
    w_list, bn_list = [], []
    for blk in blocks:
        w_list.append(jnp.stack([blk["w1"].transpose(2, 0, 1),
                                 blk["w2"].transpose(2, 0, 1)]))          # (2, 3, rc, rc)
        bn_list.append(jnp.stack([blk["bn1_g"], blk["bn1_b"],
                                  blk["bn2_g"], blk["bn2_b"]], axis=1))   # (rc, 4)
    npad = nsteps * BLOCKS_PER_STEP - nblk
    # Neutral pad blocks (all-zero weights & BN params) act as identity:
    # out = relu(0 + x) = x because every preceding real block output is >= 0.
    w_list += [jnp.zeros((2, 3, rc, rc), F32)] * npad
    bn_list += [jnp.zeros((rc, 4), F32)] * npad
    if nsteps:
        wstack = jnp.stack(w_list).reshape(
            nsteps, BLOCKS_PER_STEP, 2, 3, rc, rc).astype(BF16)
        bnstack = jnp.stack(bn_list).reshape(nsteps, BLOCKS_PER_STEP, rc, 4)
    else:
        wstack = jnp.zeros((0, BLOCKS_PER_STEP, 2, 3, rc, rc), BF16)
        bnstack = jnp.zeros((0, BLOCKS_PER_STEP, rc, 4), F32)

    return dict(wst=wst, prm=prm, masks=masks, wstack=wstack, bnstack=bnstack)


# ----------------------------------------------------------------------------
# Forward pass (wrapper = layout-only phase split + two pallas_calls)
# ----------------------------------------------------------------------------
def res_encoder_forward(prepped, x):
    B, nchns, L = x.shape
    assert L % 4 == 0, "demo assumes L divisible by 4"
    rc = prepped["prm"].shape[0]
    L2 = L // 4
    N2 = B * L2
    Np = prepped["masks"].shape[1]

    # stride-4 phase split (layout-only pass over nchns*B*L floats; no 7x
    # im2col expansion round-tripping through HBM)
    xph = x.reshape(B, nchns, L2, 4).transpose(3, 1, 0, 2).reshape(4, nchns, N2)
    xph = jnp.pad(xph, ((0, 0), (0, 0), (0, Np - N2)))

    stem_cost = pl.CostEstimate(
        flops=2 * rc * 7 * nchns * 2 * Np + 16 * rc * Np,
        transcendentals=rc,
        bytes_accessed=4 * (4 * nchns * Np + 7 * rc * nchns + 3 * rc + 3 * Np + rc * Np),
    )
    p = pl.pallas_call(
        partial(_stem_kernel, inv_n=1.0 / (2 * N2)),
        out_shape=jax.ShapeDtypeStruct((rc, Np), F32),
        compiler_params=pltpu.CompilerParams(vmem_limit_bytes=VMEM_LIMIT),
        cost_estimate=stem_cost,
    )(xph, prepped["wst"], prepped["prm"], prepped["masks"])

    nsteps = prepped["wstack"].shape[0]
    if nsteps:
        bps = prepped["wstack"].shape[1]
        res_cost = pl.CostEstimate(
            flops=nsteps * bps * (2 * 2 * rc * 3 * rc * Np + 20 * rc * Np),
            transcendentals=nsteps * bps * 2 * rc,
            bytes_accessed=(2 * rc * Np * 4 + prepped["wstack"].size * 2
                            + prepped["bnstack"].size * 4 + 3 * Np * 4),
        )
        p = pl.pallas_call(
            partial(_resblocks_kernel, inv_n=1.0 / N2, blocks_per_step=bps),
            out_shape=jax.ShapeDtypeStruct((rc, Np), F32),
            grid=(nsteps,),
            in_specs=[
                pl.BlockSpec((rc, Np), lambda i: (0, 0)),                 # act (step 0)
                pl.BlockSpec((1, bps, 2, 3, rc, rc),
                             lambda i: (i, 0, 0, 0, 0, 0)),               # bf16 weights
                pl.BlockSpec((1, bps, rc, 4), lambda i: (i, 0, 0, 0)),    # BN params
                pl.BlockSpec((3, Np), lambda i: (0, 0)),                  # masks
            ],
            out_specs=pl.BlockSpec((rc, Np), lambda i: (0, 0)),           # VMEM-resident
            compiler_params=pltpu.CompilerParams(
                dimension_semantics=("arbitrary",),
                vmem_limit_bytes=VMEM_LIMIT),
            cost_estimate=res_cost,
        )(p, prepped["wstack"], prepped["bnstack"], prepped["masks"])

    # back to the module's (B, rc, L2) layout (drop pad lanes)
    return p[:, :N2].reshape(rc, B, L2).transpose(1, 0, 2)


# ----------------------------------------------------------------------------
# Pure-JAX (XLA) reference for verification
# ----------------------------------------------------------------------------
def _conv1d_ref(x, w, stride, pad, groups=1):
    return lax.conv_general_dilated(
        x, w, window_strides=(stride,), padding=[(pad, pad)],
        dimension_numbers=("NCH", "OIH", "NCH"), feature_group_count=groups)


def _bn_ref(y, g, b):
    m = y.mean(axis=(0, 2), keepdims=True)
    v = ((y - m) ** 2).mean(axis=(0, 2), keepdims=True)
    return (y - m) / jnp.sqrt(v + BN_EPS) * g[None, :, None] + b[None, :, None]


def res_encoder_ref(params, x):
    B, nchns, L = x.shape
    rc = params["conv1_w"].shape[0]
    y = _conv1d_ref(x.reshape(B * nchns, 1, L), params["conv1_w"], 2, 3)
    y = y + params["conv1_b"][None, :, None]
    L1 = y.shape[-1]
    y = y.reshape(B, nchns, rc, L1).transpose(0, 2, 1, 3).reshape(B, rc * nchns, L1)
    y = _conv1d_ref(y, params["conv2_w"], 1, 0, groups=rc) + params["conv2_b"][None, :, None]
    y = jnp.maximum(y, 0.0)
    y = _bn_ref(y, params["bn1_g"], params["bn1_b"])
    y = lax.reduce_window(y, -jnp.inf, lax.max, (1, 1, 3), (1, 1, 2),
                          ((0, 0), (0, 0), (1, 1)))
    for blk in params["blocks"]:
        idn = y
        z = _conv1d_ref(y, blk["w1"], 1, 1)
        z = jnp.maximum(_bn_ref(z, blk["bn1_g"], blk["bn1_b"]), 0.0)
        z = _conv1d_ref(z, blk["w2"], 1, 1)
        z = _bn_ref(z, blk["bn2_g"], blk["bn2_b"])
        y = jnp.maximum(z + idn, 0.0)
    return y


if __name__ == "__main__":
    B, nchns, L = 2, 4, 64
    rc, res_layers = 8, 2
    key = jax.random.PRNGKey(0)
    kx, kp = jax.random.split(key)
    x = jax.random.normal(kx, (B, nchns, L), F32)
    params = init_params(kp, nchns, rc, res_layers)

    prepped = prepare_params(params, B, nchns, L)        # one-time glue
    fwd = jax.jit(res_encoder_forward)
    out = jax.block_until_ready(fwd(prepped, x))
    ref = jax.block_until_ready(jax.jit(res_encoder_ref)(params, x))

    assert out.shape == (B, rc, L // 4), out.shape
    err = float(jnp.max(jnp.abs(out - ref)))
    assert err < 2e-3, f"mismatch vs reference: {err}"
    print("KERNEL_OK")
</pallas_src>

<mosaic_0001>
module attributes {stable_mosaic.version = 11 : i64} {
  func.func @_stem_kernel(%arg0: memref<4x4x128xf32, #tpu.memory_space<vmem>>, %arg1: memref<7x8x4xf32, #tpu.memory_space<vmem>>, %arg2: memref<8x3xf32, #tpu.memory_space<vmem>>, %arg3: memref<3x128xf32, #tpu.memory_space<vmem>>, %arg4: memref<8x128xf32, #tpu.memory_space<vmem>>) attributes {dimension_semantics = [], scalar_prefetch = 0 : i64, scratch_operands = 0 : i64, tpu.core_type = #tpu.core_type<tc>} {
    %c0 = arith.constant 0 : index
    %c0_0 = arith.constant 0 : index
    %0 = vector.load %arg3[%c0, %c0_0] : memref<3x128xf32, #tpu.memory_space<vmem>>, vector<1x128xf32>
    %c1 = arith.constant 1 : index
    %c0_1 = arith.constant 0 : index
    %1 = vector.load %arg3[%c1, %c0_1] : memref<3x128xf32, #tpu.memory_space<vmem>>, vector<1x128xf32>
    %c2 = arith.constant 2 : index
    %c0_2 = arith.constant 0 : index
    %2 = vector.load %arg3[%c2, %c0_2] : memref<3x128xf32, #tpu.memory_space<vmem>>, vector<1x128xf32>
    %c0_3 = arith.constant 0 : index
    %c0_4 = arith.constant 0 : index
    %c0_5 = arith.constant 0 : index
    %3 = vector.load %arg0[%c0_3, %c0_4, %c0_5] : memref<4x4x128xf32, #tpu.memory_space<vmem>>, vector<1x4x128xf32>
    %4 = vector.shape_cast %3 : vector<1x4x128xf32> to vector<4x128xf32>
    %c1_6 = arith.constant 1 : index
    %c0_7 = arith.constant 0 : index
    %c0_8 = arith.constant 0 : index
    %5 = vector.load %arg0[%c1_6, %c0_7, %c0_8] : memref<4x4x128xf32, #tpu.memory_space<vmem>>, vector<1x4x128xf32>
    %6 = vector.shape_cast %5 : vector<1x4x128xf32> to vector<4x128xf32>
    %c2_9 = arith.constant 2 : index
    %c0_10 = arith.constant 0 : index
    %c0_11 = arith.constant 0 : index
    %7 = vector.load %arg0[%c2_9, %c0_10, %c0_11] : memref<4x4x128xf32, #tpu.memory_space<vmem>>, vector<1x4x128xf32>
    %8 = vector.shape_cast %7 : vector<1x4x128xf32> to vector<4x128xf32>
    %c3 = arith.constant 3 : index
    %c0_12 = arith.constant 0 : index
    %c0_13 = arith.constant 0 : index
    %9 = vector.load %arg0[%c3, %c0_12, %c0_13] : memref<4x4x128xf32, #tpu.memory_space<vmem>>, vector<1x4x128xf32>
    %10 = vector.shape_cast %9 : vector<1x4x128xf32> to vector<4x128xf32>
    %c1_i32 = arith.constant 1 : i32
    %11 = tpu.dynamic_rotate %6 by %c1_i32 dim 1 : vector<4x128xf32>, i32 -> vector<4x128xf32>
    %12 = vector.broadcast %0 : vector<1x128xf32> to vector<4x128xf32>
    %13 = arith.mulf %11, %12 : vector<4x128xf32>
    %c1_i32_14 = arith.constant 1 : i32
    %14 = tpu.dynamic_rotate %8 by %c1_i32_14 dim 1 : vector<4x128xf32>, i32 -> vector<4x128xf32>
    %15 = vector.broadcast %0 : vector<1x128xf32> to vector<4x128xf32>
    %16 = arith.mulf %14, %15 : vector<4x128xf32>
    %c1_i32_15 = arith.constant 1 : i32
    %17 = tpu.dynamic_rotate %10 by %c1_i32_15 dim 1 : vector<4x128xf32>, i32 -> vector<4x128xf32>
    %18 = vector.broadcast %0 : vector<1x128xf32> to vector<4x128xf32>
    %19 = arith.mulf %17, %18 : vector<4x128xf32>
    %c127_i32 = arith.constant 127 : i32
    %20 = tpu.dynamic_rotate %4 by %c127_i32 dim 1 : vector<4x128xf32>, i32 -> vector<4x128xf32>
    %21 = vector.broadcast %1 : vector<1x128xf32> to vector<4x128xf32>
    %22 = arith.mulf %20, %21 : vector<4x128xf32>
    %c127_i32_16 = arith.constant 127 : i32
    %23 = tpu.dynamic_rotate %6 by %c127_i32_16 dim 1 : vector<4x128xf32>, i32 -> vector<4x128xf32>
    %24 = vector.broadcast %1 : vector<1x128xf32> to vector<4x128xf32>
    %25 = arith.mulf %23, %24 : vector<4x128xf32>
    %c0_17 = arith.constant 0 : index
    %c0_18 = arith.constant 0 : index
    %c0_19 = arith.constant 0 : index
    %26 = vector.load %arg1[%c0_17, %c0_18, %c0_19] : memref<7x8x4xf32, #tpu.memory_space<vmem>>, vector<1x8x4xf32>
    %27 = vector.shape_cast %26 : vector<1x8x4xf32> to vector<8x4xf32>
    %cst = arith.constant dense<0.000000e+00> : vector<8x128xf32>
    %28 = tpu.matmul %27, %13, %cst {dimension_numbers = #tpu.dot_dimension_numbers<[1], [0], [0], [1], [0, 0, 1, 1], [], []>} : vector<8x4xf32>, vector<4x128xf32>, vector<8x128xf32> -> vector<8x128xf32>
    %c1_20 = arith.constant 1 : index
    %c0_21 = arith.constant 0 : index
    %c0_22 = arith.constant 0 : index
    %29 = vector.load %arg1[%c1_20, %c0_21, %c0_22] : memref<7x8x4xf32, #tpu.memory_space<vmem>>, vector<1x8x4xf32>
    %30 = vector.shape_cast %29 : vector<1x8x4xf32> to vector<8x4xf32>
    %cst_23 = arith.constant dense<0.000000e+00> : vector<8x128xf32>
    %31 = tpu.matmul %30, %16, %cst_23 {dimension_numbers = #tpu.dot_dimension_numbers<[1], [0], [0], [1], [0, 0, 1, 1], [], []>} : vector<8x4xf32>, vector<4x128xf32>, vector<8x128xf32> -> vector<8x128xf32>
    %32 = arith.addf %28, %31 : vector<8x128xf32>
    %c2_24 = arith.constant 2 : index
    %c0_25 = arith.constant 0 : index
    %c0_26 = arith.constant 0 : index
    %33 = vector.load %arg1[%c2_24, %c0_25, %c0_26] : memref<7x8x4xf32, #tpu.memory_space<vmem>>, vector<1x8x4xf32>
    %34 = vector.shape_cast %33 : vector<1x8x4xf32> to vector<8x4xf32>
    %cst_27 = arith.constant dense<0.000000e+00> : vector<8x128xf32>
    %35 = tpu.matmul %34, %19, %cst_27 {dimension_numbers = #tpu.dot_dimension_numbers<[1], [0], [0], [1], [0, 0, 1, 1], [], []>} : vector<8x4xf32>, vector<4x128xf32>, vector<8x128xf32> -> vector<8x128xf32>
    %36 = arith.addf %32, %35 : vector<8x128xf32>
    %c3_28 = arith.constant 3 : index
    %c0_29 = arith.constant 0 : index
    %c0_30 = arith.constant 0 : index
    %37 = vector.load %arg1[%c3_28, %c0_29, %c0_30] : memref<7x8x4xf32, #tpu.memory_space<vmem>>, vector<1x8x4xf32>
    %38 = vector.shape_cast %37 : vector<1x8x4xf32> to vector<8x4xf32>
    %cst_31 = arith.constant dense<0.000000e+00> : vector<8x128xf32>
    %39 = tpu.matmul %38, %4, %cst_31 {dimension_numbers = #tpu.dot_dimension_numbers<[1], [0], [0], [1], [0, 0, 1, 1], [], []>} : vector<8x4xf32>, vector<4x128xf32>, vector<8x128xf32> -> vector<8x128xf32>
    %40 = arith.addf %36, %39 : vector<8x128xf32>
    %c4 = arith.constant 4 : index
    %c0_32 = arith.constant 0 : index
    %c0_33 = arith.constant 0 : index
    %41 = vector.load %arg1[%c4, %c0_32, %c0_33] : memref<7x8x4xf32, #tpu.memory_space<vmem>>, vector<1x8x4xf32>
    %42 = vector.shape_cast %41 : vector<1x8x4xf32> to vector<8x4xf32>
    %cst_34 = arith.constant dense<0.000000e+00> : vector<8x128xf32>
    %43 = tpu.matmul %42, %6, %cst_34 {dimension_numbers = #tpu.dot_dimension_numbers<[1], [0], [0], [1], [0, 0, 1, 1], [], []>} : vector<8x4xf32>, vector<4x128xf32>, vector<8x128xf32> -> vector<8x128xf32>
    %44 = arith.addf %40, %43 : vector<8x128xf32>
    %c5 = arith.constant 5 : index
    %c0_35 = arith.constant 0 : index
    %c0_36 = arith.constant 0 : index
    %45 = vector.load %arg1[%c5, %c0_35, %c0_36] : memref<7x8x4xf32, #tpu.memory_space<vmem>>, vector<1x8x4xf32>
    %46 = vector.shape_cast %45 : vector<1x8x4xf32> to vector<8x4xf32>
    %cst_37 = arith.constant dense<0.000000e+00> : vector<8x128xf32>
    %47 = tpu.matmul %46, %8, %cst_37 {dimension_numbers = #tpu.dot_dimension_numbers<[1], [0], [0], [1], [0, 0, 1, 1], [], []>} : vector<8x4xf32>, vector<4x128xf32>, vector<8x128xf32> -> vector<8x128xf32>
    %48 = arith.addf %44, %47 : vector<8x128xf32>
    %c6 = arith.constant 6 : index
    %c0_38 = arith.constant 0 : index
    %c0_39 = arith.constant 0 : index
    %49 = vector.load %arg1[%c6, %c0_38, %c0_39] : memref<7x8x4xf32, #tpu.memory_space<vmem>>, vector<1x8x4xf32>
    %50 = vector.shape_cast %49 : vector<1x8x4xf32> to vector<8x4xf32>
    %cst_40 = arith.constant dense<0.000000e+00> : vector<8x128xf32>
    %51 = tpu.matmul %50, %10, %cst_40 {dimension_numbers = #tpu.dot_dimension_numbers<[1], [0], [0], [1], [0, 0, 1, 1], [], []>} : vector<8x4xf32>, vector<4x128xf32>, vector<8x128xf32> -> vector<8x128xf32>
    %52 = arith.addf %48, %51 : vector<8x128xf32>
    %c0_41 = arith.constant 0 : index
    %c0_42 = arith.constant 0 : index
    %c0_43 = arith.constant 0 : index
    %53 = vector.load %arg1[%c0_41, %c0_42, %c0_43] : memref<7x8x4xf32, #tpu.memory_space<vmem>>, vector<1x8x4xf32>
    %54 = vector.shape_cast %53 : vector<1x8x4xf32> to vector<8x4xf32>
    %cst_44 = arith.constant dense<0.000000e+00> : vector<8x128xf32>
    %55 = tpu.matmul %54, %19, %cst_44 {dimension_numbers = #tpu.dot_dimension_numbers<[1], [0], [0], [1], [0, 0, 1, 1], [], []>} : vector<8x4xf32>, vector<4x128xf32>, vector<8x128xf32> -> vector<8x128xf32>
    %c1_45 = arith.constant 1 : index
    %c0_46 = arith.constant 0 : index
    %c0_47 = arith.constant 0 : index
    %56 = vector.load %arg1[%c1_45, %c0_46, %c0_47] : memref<7x8x4xf32, #tpu.memory_space<vmem>>, vector<1x8x4xf32>
    %57 = vector.shape_cast %56 : vector<1x8x4xf32> to vector<8x4xf32>
    %cst_48 = arith.constant dense<0.000000e+00> : vector<8x128xf32>
    %58 = tpu.matmul %57, %4, %cst_48 {dimension_numbers = #tpu.dot_dimension_numbers<[1], [0], [0], [1], [0, 0, 1, 1], [], []>} : vector<8x4xf32>, vector<4x128xf32>, vector<8x128xf32> -> vector<8x128xf32>
    %59 = arith.addf %55, %58 : vector<8x128xf32>
    %c2_49 = arith.constant 2 : index
    %c0_50 = arith.constant 0 : index
    %c0_51 = arith.constant 0 : index
    %60 = vector.load %arg1[%c2_49, %c0_50, %c0_51] : memref<7x8x4xf32, #tpu.memory_space<vmem>>, vector<1x8x4xf32>
    %61 = vector.shape_cast %60 : vector<1x8x4xf32> to vector<8x4xf32>
    %cst_52 = arith.constant dense<0.000000e+00> : vector<8x128xf32>
    %62 = tpu.matmul %61, %6, %cst_52 {dimension_numbers = #tpu.dot_dimension_numbers<[1], [0], [0], [1], [0, 0, 1, 1], [], []>} : vector<8x4xf32>, vector<4x128xf32>, vector<8x128xf32> -> vector<8x128xf32>
    %63 = arith.addf %59, %62 : vector<8x128xf32>
    %c3_53 = arith.constant 3 : index
    %c0_54 = arith.constant 0 : index
    %c0_55 = arith.constant 0 : index
    %64 = vector.load %arg1[%c3_53, %c0_54, %c0_55] : memref<7x8x4xf32, #tpu.memory_space<vmem>>, vector<1x8x4xf32>
    %65 = vector.shape_cast %64 : vector<1x8x4xf32> to vector<8x4xf32>
    %cst_56 = arith.constant dense<0.000000e+00> : vector<8x128xf32>
    %66 = tpu.matmul %65, %8, %cst_56 {dimension_numbers = #tpu.dot_dimension_numbers<[1], [0], [0], [1], [0, 0, 1, 1], [], []>} : vector<8x4xf32>, vector<4x128xf32>, vector<8x128xf32> -> vector<8x128xf32>
    %67 = arith.addf %63, %66 : vector<8x128xf32>
    %c4_57 = arith.constant 4 : index
    %c0_58 = arith.constant 0 : index
    %c0_59 = arith.constant 0 : index
    %68 = vector.load %arg1[%c4_57, %c0_58, %c0_59] : memref<7x8x4xf32, #tpu.memory_space<vmem>>, vector<1x8x4xf32>
    %69 = vector.shape_cast %68 : vector<1x8x4xf32> to vector<8x4xf32>
    %cst_60 = arith.constant dense<0.000000e+00> : vector<8x128xf32>
    %70 = tpu.matmul %69, %10, %cst_60 {dimension_numbers = #tpu.dot_dimension_numbers<[1], [0], [0], [1], [0, 0, 1, 1], [], []>} : vector<8x4xf32>, vector<4x128xf32>, vector<8x128xf32> -> vector<8x128xf32>
    %71 = arith.addf %67, %70 : vector<8x128xf32>
    %c5_61 = arith.constant 5 : index
    %c0_62 = arith.constant 0 : index
    %c0_63 = arith.constant 0 : index
    %72 = vector.load %arg1[%c5_61, %c0_62, %c0_63] : memref<7x8x4xf32, #tpu.memory_space<vmem>>, vector<1x8x4xf32>
    %73 = vector.shape_cast %72 : vector<1x8x4xf32> to vector<8x4xf32>
    %cst_64 = arith.constant dense<0.000000e+00> : vector<8x128xf32>
    %74 = tpu.matmul %73, %22, %cst_64 {dimension_numbers = #tpu.dot_dimension_numbers<[1], [0], [0], [1], [0, 0, 1, 1], [], []>} : vector<8x4xf32>, vector<4x128xf32>, vector<8x128xf32> -> vector<8x128xf32>
    %75 = arith.addf %71, %74 : vector<8x128xf32>
    %c6_65 = arith.constant 6 : index
    %c0_66 = arith.constant 0 : index
    %c0_67 = arith.constant 0 : index
    %76 = vector.load %arg1[%c6_65, %c0_66, %c0_67] : memref<7x8x4xf32, #tpu.memory_space<vmem>>, vector<1x8x4xf32>
    %77 = vector.shape_cast %76 : vector<1x8x4xf32> to vector<8x4xf32>
    %cst_68 = arith.constant dense<0.000000e+00> : vector<8x128xf32>
    %78 = tpu.matmul %77, %25, %cst_68 {dimension_numbers = #tpu.dot_dimension_numbers<[1], [0], [0], [1], [0, 0, 1, 1], [], []>} : vector<8x4xf32>, vector<4x128xf32>, vector<8x128xf32> -> vector<8x128xf32>
    %79 = arith.addf %75, %78 : vector<8x128xf32>
    %c0_69 = arith.constant 0 : index
    %c0_70 = arith.constant 0 : index
    %80 = vector.load %arg2[%c0_69, %c0_70] : memref<8x3xf32, #tpu.memory_space<vmem>>, vector<8x1xf32>
    %c0_71 = arith.constant 0 : index
    %c1_72 = arith.constant 1 : index
    %81 = vector.load %arg2[%c0_71, %c1_72] : memref<8x3xf32, #tpu.memory_space<vmem>>, vector<8x1xf32>
    %c0_73 = arith.constant 0 : index
    %c2_74 = arith.constant 2 : index
    %82 = vector.load %arg2[%c0_73, %c2_74] : memref<8x3xf32, #tpu.memory_space<vmem>>, vector<8x1xf32>
    %83 = vector.broadcast %80 : vector<8x1xf32> to vector<8x128xf32>
    %84 = arith.addf %52, %83 : vector<8x128xf32>
    %cst_75 = arith.constant 0.000000e+00 : f32
    %85 = vector.broadcast %cst_75 : f32 to vector<8x128xf32>
    %86 = arith.maximumf %84, %85 : vector<8x128xf32>
    %87 = vector.broadcast %80 : vector<8x1xf32> to vector<8x128xf32>
    %88 = arith.addf %79, %87 : vector<8x128xf32>
    %cst_76 = arith.constant 0.000000e+00 : f32
    %89 = vector.broadcast %cst_76 : f32 to vector<8x128xf32>
    %90 = arith.maximumf %88, %89 : vector<8x128xf32>
    %91 = vector.broadcast %2 : vector<1x128xf32> to vector<8x128xf32>
    %92 = arith.mulf %86, %91 : vector<8x128xf32>
    %93 = vector.broadcast %2 : vector<1x128xf32> to vector<8x128xf32>
    %94 = arith.mulf %90, %93 : vector<8x128xf32>
    %cst_77 = arith.constant dense<0.000000e+00> : vector<8xf32>
    %95 = vector.multi_reduction <add>, %92, %cst_77 [1] : vector<8x128xf32> to vector<8xf32>
    %96 = vector.shape_cast %95 : vector<8xf32> to vector<8x1xf32>
    %cst_78 = arith.constant dense<0.000000e+00> : vector<8xf32>
    %97 = vector.multi_reduction <add>, %94, %cst_78 [1] : vector<8x128xf32> to vector<8xf32>
    %98 = vector.shape_cast %97 : vector<8xf32> to vector<8x1xf32>
    %99 = arith.addf %96, %98 : vector<8x1xf32>
    %100 = arith.mulf %92, %92 : vector<8x128xf32>
    %cst_79 = arith.constant dense<0.000000e+00> : vector<8xf32>
    %101 = vector.multi_reduction <add>, %100, %cst_79 [1] : vector<8x128xf32> to vector<8xf32>
    %102 = vector.shape_cast %101 : vector<8xf32> to vector<8x1xf32>
    %103 = arith.mulf %94, %94 : vector<8x128xf32>
    %cst_80 = arith.constant dense<0.000000e+00> : vector<8xf32>
    %104 = vector.multi_reduction <add>, %103, %cst_80 [1] : vector<8x128xf32> to vector<8xf32>
    %105 = vector.shape_cast %104 : vector<8xf32> to vector<8x1xf32>
    %106 = arith.addf %102, %105 : vector<8x1xf32>
    %cst_81 = arith.constant 1.562500e-02 : f32
    %107 = vector.broadcast %cst_81 : f32 to vector<8x1xf32>
    %108 = arith.mulf %99, %107 : vector<8x1xf32>
    %cst_82 = arith.constant 1.562500e-02 : f32
    %109 = vector.broadcast %cst_82 : f32 to vector<8x1xf32>
    %110 = arith.mulf %106, %109 : vector<8x1xf32>
    %111 = arith.mulf %108, %108 : vector<8x1xf32>
    %112 = arith.subf %110, %111 : vector<8x1xf32>
    %cst_83 = arith.constant 0.000000e+00 : f32
    %113 = vector.broadcast %cst_83 : f32 to vector<8x1xf32>
    %114 = arith.maximumf %112, %113 : vector<8x1xf32>
    %cst_84 = arith.constant 9.99999974E-6 : f32
    %115 = vector.broadcast %cst_84 : f32 to vector<8x1xf32>
    %116 = arith.addf %114, %115 : vector<8x1xf32>
    %117 = math.rsqrt %116 : vector<8x1xf32>
    %118 = arith.mulf %81, %117 : vector<8x1xf32>
    %119 = arith.mulf %108, %118 : vector<8x1xf32>
    %120 = arith.subf %82, %119 : vector<8x1xf32>
    %121 = vector.broadcast %118 : vector<8x1xf32> to vector<8x128xf32>
    %122 = arith.mulf %86, %121 : vector<8x128xf32>
    %123 = vector.broadcast %120 : vector<8x1xf32> to vector<8x128xf32>
    %124 = arith.addf %122, %123 : vector<8x128xf32>
    %125 = vector.broadcast %118 : vector<8x1xf32> to vector<8x128xf32>
    %126 = arith.mulf %90, %125 : vector<8x128xf32>
    %127 = vector.broadcast %120 : vector<8x1xf32> to vector<8x128xf32>
    %128 = arith.addf %126, %127 : vector<8x128xf32>
    %c1_i32_85 = arith.constant 1 : i32
    %129 = tpu.dynamic_rotate %128 by %c1_i32_85 dim 1 : vector<8x128xf32>, i32 -> vector<8x128xf32>
    %cst_86 = arith.constant 5.000000e-01 : f32
    %130 = vector.broadcast %cst_86 : f32 to vector<1x128xf32>
    %131 = arith.cmpf ogt, %0, %130 : vector<1x128xf32>
    %cst_87 = arith.constant -3.40282347E+38 : f32
    %132 = vector.shape_cast %131 : vector<1x128xi1> to vector<1x128xi1>
    %133 = vector.broadcast %132 : vector<1x128xi1> to vector<8x128xi1>
    %134 = vector.broadcast %cst_87 : f32 to vector<8x128xf32>
    %135 = arith.select %133, %129, %134 : vector<8x128xi1>, vector<8x128xf32>
    %136 = arith.maximumf %135, %124 : vector<8x128xf32>
    %137 = arith.maximumf %136, %128 : vector<8x128xf32>
    %138 = vector.broadcast %2 : vector<1x128xf32> to vector<8x128xf32>
    %139 = arith.mulf %137, %138 : vector<8x128xf32>
    %c0_88 = arith.constant 0 : index
    %c0_89 = arith.constant 0 : index
    %140 = vector.load %arg4[%c0_88, %c0_89] : memref<8x128xf32, #tpu.memory_space<vmem>>, vector<8x128xf32>
    tpu.vector_store %arg4[%c0_88, %c0_89], %139 {strides = array<i32>} : memref<8x128xf32, #tpu.memory_space<vmem>>, vector<8x128xf32>,
    return
  }
}

module attributes {stable_mosaic.version = 11 : i64} {
  func.func @_resblocks_kernel(%arg0: i32, %arg1: memref<8x128xf32, #tpu.memory_space<vmem>>, %arg2: memref<1x2x2x3x8x8xbf16, #tpu.memory_space<vmem>>, %arg3: memref<1x2x8x4xf32, #tpu.memory_space<vmem>>, %arg4: memref<3x128xf32, #tpu.memory_space<vmem>>, %arg5: memref<8x128xf32, #tpu.memory_space<vmem>>) attributes {dimension_semantics = [#tpu.dimension_semantics<arbitrary>], iteration_bounds = array<i64: 1>, scalar_prefetch = 0 : i64, scratch_operands = 0 : i64, tpu.core_type = #tpu.core_type<tc>, window_params = [{pipeline_mode = #tpu.pipeline_mode<synchronous>, transform_indices = @transform_0, window_bounds = array<i64: 8, 128>}, {transform_indices = @transform_1, window_bounds = array<i64: 1, 2, 2, 3, 8, 8>}, {transform_indices = @transform_2, window_bounds = array<i64: 1, 2, 8, 4>}, {pipeline_mode = #tpu.pipeline_mode<synchronous>, transform_indices = @transform_3, window_bounds = array<i64: 3, 128>}, {pipeline_mode = #tpu.pipeline_mode<synchronous>, transform_indices = @transform_4, window_bounds = array<i64: 8, 128>}]} {
    %c0_i32 = arith.constant 0 : i32
    %0 = arith.cmpi eq, %arg0, %c0_i32 : i32
    %1 = arith.extui %0 : i1 to i32
    %c0_i32_0 = arith.constant 0 : i32
    %2 = arith.cmpi ne, %1, %c0_i32_0 : i32
    scf.if %2 {
      %c0_156 = arith.constant 0 : index
      %c0_157 = arith.constant 0 : index
      %218 = vector.load %arg1[%c0_156, %c0_157] : memref<8x128xf32, #tpu.memory_space<vmem>>, vector<8x128xf32>
      %c0_158 = arith.constant 0 : index
      %c0_159 = arith.constant 0 : index
      %219 = vector.load %arg5[%c0_158, %c0_159] : memref<8x128xf32, #tpu.memory_space<vmem>>, vector<8x128xf32>
      tpu.vector_store %arg5[%c0_158, %c0_159], %218 {strides = array<i32>} : memref<8x128xf32, #tpu.memory_space<vmem>>, vector<8x128xf32>,
    } else {
    }
    %c0 = arith.constant 0 : index
    %c0_1 = arith.constant 0 : index
    %3 = vector.load %arg4[%c0, %c0_1] : memref<3x128xf32, #tpu.memory_space<vmem>>, vector<1x128xf32>
    %c1 = arith.constant 1 : index
    %c0_2 = arith.constant 0 : index
    %4 = vector.load %arg4[%c1, %c0_2] : memref<3x128xf32, #tpu.memory_space<vmem>>, vector<1x128xf32>
    %c2 = arith.constant 2 : index
    %c0_3 = arith.constant 0 : index
    %5 = vector.load %arg4[%c2, %c0_3] : memref<3x128xf32, #tpu.memory_space<vmem>>, vector<1x128xf32>
    %c0_4 = arith.constant 0 : index
    %c0_5 = arith.constant 0 : index
    %6 = vector.load %arg5[%c0_4, %c0_5] : memref<8x128xf32, #tpu.memory_space<vmem>>, vector<8x128xf32>
    %c0_6 = arith.constant 0 : index
    %c0_7 = arith.constant 0 : index
    %c0_8 = arith.constant 0 : index
    %c0_9 = arith.constant 0 : index
    %7 = vector.load %arg3[%c0_6, %c0_7, %c0_8, %c0_9] : memref<1x2x8x4xf32, #tpu.memory_space<vmem>>, vector<1x1x8x1xf32>
    %8 = vector.shape_cast %7 : vector<1x1x8x1xf32> to vector<8x1xf32>
    %c0_10 = arith.constant 0 : index
    %c0_11 = arith.constant 0 : index
    %c0_12 = arith.constant 0 : index
    %c1_13 = arith.constant 1 : index
    %9 = vector.load %arg3[%c0_10, %c0_11, %c0_12, %c1_13] : memref<1x2x8x4xf32, #tpu.memory_space<vmem>>, vector<1x1x8x1xf32>
    %10 = vector.shape_cast %9 : vector<1x1x8x1xf32> to vector<8x1xf32>
    %c0_14 = arith.constant 0 : index
    %c0_15 = arith.constant 0 : index
    %c0_16 = arith.constant 0 : index
    %c2_17 = arith.constant 2 : index
    %11 = vector.load %arg3[%c0_14, %c0_15, %c0_16, %c2_17] : memref<1x2x8x4xf32, #tpu.memory_space<vmem>>, vector<1x1x8x1xf32>
    %12 = vector.shape_cast %11 : vector<1x1x8x1xf32> to vector<8x1xf32>
    %c0_18 = arith.constant 0 : index
    %c0_19 = arith.constant 0 : index
    %c0_20 = arith.constant 0 : index
    %c3 = arith.constant 3 : index
    %13 = vector.load %arg3[%c0_18, %c0_19, %c0_20, %c3] : memref<1x2x8x4xf32, #tpu.memory_space<vmem>>, vector<1x1x8x1xf32>
    %14 = vector.shape_cast %13 : vector<1x1x8x1xf32> to vector<8x1xf32>
    %c1_i32 = arith.constant 1 : i32
    %15 = tpu.dynamic_rotate %6 by %c1_i32 dim 1 : vector<8x128xf32>, i32 -> vector<8x128xf32>
    %16 = vector.broadcast %3 : vector<1x128xf32> to vector<8x128xf32>
    %17 = arith.mulf %15, %16 : vector<8x128xf32>
    %18 = arith.truncf %17 : vector<8x128xf32> to vector<8x128xbf16>
    %c127_i32 = arith.constant 127 : i32
    %19 = tpu.dynamic_rotate %6 by %c127_i32 dim 1 : vector<8x128xf32>, i32 -> vector<8x128xf32>
    %20 = vector.broadcast %4 : vector<1x128xf32> to vector<8x128xf32>
    %21 = arith.mulf %19, %20 : vector<8x128xf32>
    %22 = arith.truncf %21 : vector<8x128xf32> to vector<8x128xbf16>
    %c0_21 = arith.constant 0 : index
    %c0_22 = arith.constant 0 : index
    %c0_23 = arith.constant 0 : index
    %c0_24 = arith.constant 0 : index
    %c0_25 = arith.constant 0 : index
    %c0_26 = arith.constant 0 : index
    %23 = vector.load %arg2[%c0_21, %c0_22, %c0_23, %c0_24, %c0_25, %c0_26] : memref<1x2x2x3x8x8xbf16, #tpu.memory_space<vmem>>, vector<1x1x1x1x8x8xbf16>
    %24 = vector.shape_cast %23 : vector<1x1x1x1x8x8xbf16> to vector<8x8xbf16>
    %cst = arith.constant dense<0.000000e+00> : vector<8x128xf32>
    %25 = tpu.matmul %24, %18, %cst {dimension_numbers = #tpu.dot_dimension_numbers<[1], [0], [0], [1], [0, 0, 1, 1], [], []>} : vector<8x8xbf16>, vector<8x128xbf16>, vector<8x128xf32> -> vector<8x128xf32>
    %c0_27 = arith.constant 0 : index
    %c0_28 = arith.constant 0 : index
    %c0_29 = arith.constant 0 : index
    %c1_30 = arith.constant 1 : index
    %c0_31 = arith.constant 0 : index
    %c0_32 = arith.constant 0 : index
    %26 = vector.load %arg2[%c0_27, %c0_28, %c0_29, %c1_30, %c0_31, %c0_32] : memref<1x2x2x3x8x8xbf16, #tpu.memory_space<vmem>>, vector<1x1x1x1x8x8xbf16>
    %27 = vector.shape_cast %26 : vector<1x1x1x1x8x8xbf16> to vector<8x8xbf16>
    %28 = arith.truncf %6 : vector<8x128xf32> to vector<8x128xbf16>
    %cst_33 = arith.constant dense<0.000000e+00> : vector<8x128xf32>
    %29 = tpu.matmul %27, %28, %cst_33 {dimension_numbers = #tpu.dot_dimension_numbers<[1], [0], [0], [1], [0, 0, 1, 1], [], []>} : vector<8x8xbf16>, vector<8x128xbf16>, vector<8x128xf32> -> vector<8x128xf32>
    %30 = arith.addf %25, %29 : vector<8x128xf32>
    %c0_34 = arith.constant 0 : index
    %c0_35 = arith.constant 0 : index
    %c0_36 = arith.constant 0 : index
    %c2_37 = arith.constant 2 : index
    %c0_38 = arith.constant 0 : index
    %c0_39 = arith.constant 0 : index
    %31 = vector.load %arg2[%c0_34, %c0_35, %c0_36, %c2_37, %c0_38, %c0_39] : memref<1x2x2x3x8x8xbf16, #tpu.memory_space<vmem>>, vector<1x1x1x1x8x8xbf16>
    %32 = vector.shape_cast %31 : vector<1x1x1x1x8x8xbf16> to vector<8x8xbf16>
    %cst_40 = arith.constant dense<0.000000e+00> : vector<8x128xf32>
    %33 = tpu.matmul %32, %22, %cst_40 {dimension_numbers = #tpu.dot_dimension_numbers<[1], [0], [0], [1], [0, 0, 1, 1], [], []>} : vector<8x8xbf16>, vector<8x128xbf16>, vector<8x128xf32> -> vector<8x128xf32>
    %34 = arith.addf %30, %33 : vector<8x128xf32>
    %35 = vector.broadcast %5 : vector<1x128xf32> to vector<8x128xf32>
    %36 = arith.mulf %34, %35 : vector<8x128xf32>
    %cst_41 = arith.constant dense<0.000000e+00> : vector<8xf32>
    %37 = vector.multi_reduction <add>, %36, %cst_41 [1] : vector<8x128xf32> to vector<8xf32>
    %38 = vector.shape_cast %37 : vector<8xf32> to vector<8x1xf32>
    %39 = arith.mulf %36, %36 : vector<8x128xf32>
    %cst_42 = arith.constant dense<0.000000e+00> : vector<8xf32>
    %40 = vector.multi_reduction <add>, %39, %cst_42 [1] : vector<8x128xf32> to vector<8xf32>
    %41 = vector.shape_cast %40 : vector<8xf32> to vector<8x1xf32>
    %cst_43 = arith.constant 3.125000e-02 : f32
    %42 = vector.broadcast %cst_43 : f32 to vector<8x1xf32>
    %43 = arith.mulf %38, %42 : vector<8x1xf32>
    %cst_44 = arith.constant 3.125000e-02 : f32
    %44 = vector.broadcast %cst_44 : f32 to vector<8x1xf32>
    %45 = arith.mulf %41, %44 : vector<8x1xf32>
    %46 = arith.mulf %43, %43 : vector<8x1xf32>
    %47 = arith.subf %45, %46 : vector<8x1xf32>
    %cst_45 = arith.constant 0.000000e+00 : f32
    %48 = vector.broadcast %cst_45 : f32 to vector<8x1xf32>
    %49 = arith.maximumf %47, %48 : vector<8x1xf32>
    %cst_46 = arith.constant 9.99999974E-6 : f32
    %50 = vector.broadcast %cst_46 : f32 to vector<8x1xf32>
    %51 = arith.addf %49, %50 : vector<8x1xf32>
    %52 = math.rsqrt %51 : vector<8x1xf32>
    %53 = arith.mulf %8, %52 : vector<8x1xf32>
    %54 = vector.broadcast %53 : vector<8x1xf32> to vector<8x128xf32>
    %55 = arith.mulf %34, %54 : vector<8x128xf32>
    %56 = arith.mulf %43, %53 : vector<8x1xf32>
    %57 = arith.subf %10, %56 : vector<8x1xf32>
    %58 = vector.broadcast %57 : vector<8x1xf32> to vector<8x128xf32>
    %59 = arith.addf %55, %58 : vector<8x128xf32>
    %cst_47 = arith.constant 0.000000e+00 : f32
    %60 = vector.broadcast %cst_47 : f32 to vector<8x128xf32>
    %61 = arith.maximumf %59, %60 : vector<8x128xf32>
    %c1_i32_48 = arith.constant 1 : i32
    %62 = tpu.dynamic_rotate %61 by %c1_i32_48 dim 1 : vector<8x128xf32>, i32 -> vector<8x128xf32>
    %63 = vector.broadcast %3 : vector<1x128xf32> to vector<8x128xf32>
    %64 = arith.mulf %62, %63 : vector<8x128xf32>
    %65 = arith.truncf %64 : vector<8x128xf32> to vector<8x128xbf16>
    %c127_i32_49 = arith.constant 127 : i32
    %66 = tpu.dynamic_rotate %61 by %c127_i32_49 dim 1 : vector<8x128xf32>, i32 -> vector<8x128xf32>
    %67 = vector.broadcast %4 : vector<1x128xf32> to vector<8x128xf32>
    %68 = arith.mulf %66, %67 : vector<8x128xf32>
    %69 = arith.truncf %68 : vector<8x128xf32> to vector<8x128xbf16>
    %c0_50 = arith.constant 0 : index
    %c0_51 = arith.constant 0 : index
    %c1_52 = arith.constant 1 : index
    %c0_53 = arith.constant 0 : index
    %c0_54 = arith.constant 0 : index
    %c0_55 = arith.constant 0 : index
    %70 = vector.load %arg2[%c0_50, %c0_51, %c1_52, %c0_53, %c0_54, %c0_55] : memref<1x2x2x3x8x8xbf16, #tpu.memory_space<vmem>>, vector<1x1x1x1x8x8xbf16>
    %71 = vector.shape_cast %70 : vector<1x1x1x1x8x8xbf16> to vector<8x8xbf16>
    %cst_56 = arith.constant dense<0.000000e+00> : vector<8x128xf32>
    %72 = tpu.matmul %71, %65, %cst_56 {dimension_numbers = #tpu.dot_dimension_numbers<[1], [0], [0], [1], [0, 0, 1, 1], [], []>} : vector<8x8xbf16>, vector<8x128xbf16>, vector<8x128xf32> -> vector<8x128xf32>
    %c0_57 = arith.constant 0 : index
    %c0_58 = arith.constant 0 : index
    %c1_59 = arith.constant 1 : index
    %c1_60 = arith.constant 1 : index
    %c0_61 = arith.constant 0 : index
    %c0_62 = arith.constant 0 : index
    %73 = vector.load %arg2[%c0_57, %c0_58, %c1_59, %c1_60, %c0_61, %c0_62] : memref<1x2x2x3x8x8xbf16, #tpu.memory_space<vmem>>, vector<1x1x1x1x8x8xbf16>
    %74 = vector.shape_cast %73 : vector<1x1x1x1x8x8xbf16> to vector<8x8xbf16>
    %75 = arith.truncf %61 : vector<8x128xf32> to vector<8x128xbf16>
    %cst_63 = arith.constant dense<0.000000e+00> : vector<8x128xf32>
    %76 = tpu.matmul %74, %75, %cst_63 {dimension_numbers = #tpu.dot_dimension_numbers<[1], [0], [0], [1], [0, 0, 1, 1], [], []>} : vector<8x8xbf16>, vector<8x128xbf16>, vector<8x128xf32> -> vector<8x128xf32>
    %77 = arith.addf %72, %76 : vector<8x128xf32>
    %c0_64 = arith.constant 0 : index
    %c0_65 = arith.constant 0 : index
    %c1_66 = arith.constant 1 : index
    %c2_67 = arith.constant 2 : index
    %c0_68 = arith.constant 0 : index
    %c0_69 = arith.constant 0 : index
    %78 = vector.load %arg2[%c0_64, %c0_65, %c1_66, %c2_67, %c0_68, %c0_69] : memref<1x2x2x3x8x8xbf16, #tpu.memory_space<vmem>>, vector<1x1x1x1x8x8xbf16>
    %79 = vector.shape_cast %78 : vector<1x1x1x1x8x8xbf16> to vector<8x8xbf16>
    %cst_70 = arith.constant dense<0.000000e+00> : vector<8x128xf32>
    %80 = tpu.matmul %79, %69, %cst_70 {dimension_numbers = #tpu.dot_dimension_numbers<[1], [0], [0], [1], [0, 0, 1, 1], [], []>} : vector<8x8xbf16>, vector<8x128xbf16>, vector<8x128xf32> -> vector<8x128xf32>
    %81 = arith.addf %77, %80 : vector<8x128xf32>
    %82 = vector.broadcast %5 : vector<1x128xf32> to vector<8x128xf32>
    %83 = arith.mulf %81, %82 : vector<8x128xf32>
    %cst_71 = arith.constant dense<0.000000e+00> : vector<8xf32>
    %84 = vector.multi_reduction <add>, %83, %cst_71 [1] : vector<8x128xf32> to vector<8xf32>
    %85 = vector.shape_cast %84 : vector<8xf32> to vector<8x1xf32>
    %86 = arith.mulf %83, %83 : vector<8x128xf32>
    %cst_72 = arith.constant dense<0.000000e+00> : vector<8xf32>
    %87 = vector.multi_reduction <add>, %86, %cst_72 [1] : vector<8x128xf32> to vector<8xf32>
    %88 = vector.shape_cast %87 : vector<8xf32> to vector<8x1xf32>
    %cst_73 = arith.constant 3.125000e-02 : f32
    %89 = vector.broadcast %cst_73 : f32 to vector<8x1xf32>
    %90 = arith.mulf %85, %89 : vector<8x1xf32>
    %cst_74 = arith.constant 3.125000e-02 : f32
    %91 = vector.broadcast %cst_74 : f32 to vector<8x1xf32>
    %92 = arith.mulf %88, %91 : vector<8x1xf32>
    %93 = arith.mulf %90, %90 : vector<8x1xf32>
    %94 = arith.subf %92, %93 : vector<8x1xf32>
    %cst_75 = arith.constant 0.000000e+00 : f32
    %95 = vector.broadcast %cst_75 : f32 to vector<8x1xf32>
    %96 = arith.maximumf %94, %95 : vector<8x1xf32>
    %cst_76 = arith.constant 9.99999974E-6 : f32
    %97 = vector.broadcast %cst_76 : f32 to vector<8x1xf32>
    %98 = arith.addf %96, %97 : vector<8x1xf32>
    %99 = math.rsqrt %98 : vector<8x1xf32>
    %100 = arith.mulf %12, %99 : vector<8x1xf32>
    %101 = vector.broadcast %100 : vector<8x1xf32> to vector<8x128xf32>
    %102 = arith.mulf %81, %101 : vector<8x128xf32>
    %103 = arith.mulf %90, %100 : vector<8x1xf32>
    %104 = arith.subf %14, %103 : vector<8x1xf32>
    %105 = vector.broadcast %104 : vector<8x1xf32> to vector<8x128xf32>
    %106 = arith.addf %102, %105 : vector<8x128xf32>
    %107 = arith.addf %106, %6 : vector<8x128xf32>
    %cst_77 = arith.constant 0.000000e+00 : f32
    %108 = vector.broadcast %cst_77 : f32 to vector<8x128xf32>
    %109 = arith.maximumf %107, %108 : vector<8x128xf32>
    %110 = vector.broadcast %5 : vector<1x128xf32> to vector<8x128xf32>
    %111 = arith.mulf %109, %110 : vector<8x128xf32>
    %c0_78 = arith.constant 0 : index
    %c1_79 = arith.constant 1 : index
    %c0_80 = arith.constant 0 : index
    %c0_81 = arith.constant 0 : index
    %112 = vector.load %arg3[%c0_78, %c1_79, %c0_80, %c0_81] : memref<1x2x8x4xf32, #tpu.memory_space<vmem>>, vector<1x1x8x1xf32>
    %113 = vector.shape_cast %112 : vector<1x1x8x1xf32> to vector<8x1xf32>
    %c0_82 = arith.constant 0 : index
    %c1_83 = arith.constant 1 : index
    %c0_84 = arith.constant 0 : index
    %c1_85 = arith.constant 1 : index
    %114 = vector.load %arg3[%c0_82, %c1_83, %c0_84, %c1_85] : memref<1x2x8x4xf32, #tpu.memory_space<vmem>>, vector<1x1x8x1xf32>
    %115 = vector.shape_cast %114 : vector<1x1x8x1xf32> to vector<8x1xf32>
    %c0_86 = arith.constant 0 : index
    %c1_87 = arith.constant 1 : index
    %c0_88 = arith.constant 0 : index
    %c2_89 = arith.constant 2 : index
    %116 = vector.load %arg3[%c0_86, %c1_87, %c0_88, %c2_89] : memref<1x2x8x4xf32, #tpu.memory_space<vmem>>, vector<1x1x8x1xf32>
    %117 = vector.shape_cast %116 : vector<1x1x8x1xf32> to vector<8x1xf32>
    %c0_90 = arith.constant 0 : index
    %c1_91 = arith.constant 1 : index
    %c0_92 = arith.constant 0 : index
    %c3_93 = arith.constant 3 : index
    %118 = vector.load %arg3[%c0_90, %c1_91, %c0_92, %c3_93] : memref<1x2x8x4xf32, #tpu.memory_space<vmem>>, vector<1x1x8x1xf32>
    %119 = vector.shape_cast %118 : vector<1x1x8x1xf32> to vector<8x1xf32>
    %c1_i32_94 = arith.constant 1 : i32
    %120 = tpu.dynamic_rotate %111 by %c1_i32_94 dim 1 : vector<8x128xf32>, i32 -> vector<8x128xf32>
    %121 = vector.broadcast %3 : vector<1x128xf32> to vector<8x128xf32>
    %122 = arith.mulf %120, %121 : vector<8x128xf32>
    %123 = arith.truncf %122 : vector<8x128xf32> to vector<8x128xbf16>
    %c127_i32_95 = arith.constant 127 : i32
    %124 = tpu.dynamic_rotate %111 by %c127_i32_95 dim 1 : vector<8x128xf32>, i32 -> vector<8x128xf32>
    %125 = vector.broadcast %4 : vector<1x128xf32> to vector<8x128xf32>
    %126 = arith.mulf %124, %125 : vector<8x128xf32>
    %127 = arith.truncf %126 : vector<8x128xf32> to vector<8x128xbf16>
    %c0_96 = arith.constant 0 : index
    %c1_97 = arith.constant 1 : index
    %c0_98 = arith.constant 0 : index
    %c0_99 = arith.constant 0 : index
    %c0_100 = arith.constant 0 : index
    %c0_101 = arith.constant 0 : index
    %128 = vector.load %arg2[%c0_96, %c1_97, %c0_98, %c0_99, %c0_100, %c0_101] : memref<1x2x2x3x8x8xbf16, #tpu.memory_space<vmem>>, vector<1x1x1x1x8x8xbf16>
    %129 = vector.shape_cast %128 : vector<1x1x1x1x8x8xbf16> to vector<8x8xbf16>
    %cst_102 = arith.constant dense<0.000000e+00> : vector<8x128xf32>
    %130 = tpu.matmul %129, %123, %cst_102 {dimension_numbers = #tpu.dot_dimension_numbers<[1], [0], [0], [1], [0, 0, 1, 1], [], []>} : vector<8x8xbf16>, vector<8x128xbf16>, vector<8x128xf32> -> vector<8x128xf32>
    %c0_103 = arith.constant 0 : index
    %c1_104 = arith.constant 1 : index
    %c0_105 = arith.constant 0 : index
    %c1_106 = arith.constant 1 : index
    %c0_107 = arith.constant 0 : index
    %c0_108 = arith.constant 0 : index
    %131 = vector.load %arg2[%c0_103, %c1_104, %c0_105, %c1_106, %c0_107, %c0_108] : memref<1x2x2x3x8x8xbf16, #tpu.memory_space<vmem>>, vector<1x1x1x1x8x8xbf16>
    %132 = vector.shape_cast %131 : vector<1x1x1x1x8x8xbf16> to vector<8x8xbf16>
    %133 = arith.truncf %111 : vector<8x128xf32> to vector<8x128xbf16>
    %cst_109 = arith.constant dense<0.000000e+00> : vector<8x128xf32>
    %134 = tpu.matmul %132, %133, %cst_109 {dimension_numbers = #tpu.dot_dimension_numbers<[1], [0], [0], [1], [0, 0, 1, 1], [], []>} : vector<8x8xbf16>, vector<8x128xbf16>, vector<8x128xf32> -> vector<8x128xf32>
    %135 = arith.addf %130, %134 : vector<8x128xf32>
    %c0_110 = arith.constant 0 : index
    %c1_111 = arith.constant 1 : index
    %c0_112 = arith.constant 0 : index
    %c2_113 = arith.constant 2 : index
    %c0_114 = arith.constant 0 : index
    %c0_115 = arith.constant 0 : index
    %136 = vector.load %arg2[%c0_110, %c1_111, %c0_112, %c2_113, %c0_114, %c0_115] : memref<1x2x2x3x8x8xbf16, #tpu.memory_space<vmem>>, vector<1x1x1x1x8x8xbf16>
    %137 = vector.shape_cast %136 : vector<1x1x1x1x8x8xbf16> to vector<8x8xbf16>
    %cst_116 = arith.constant dense<0.000000e+00> : vector<8x128xf32>
    %138 = tpu.matmul %137, %127, %cst_116 {dimension_numbers = #tpu.dot_dimension_numbers<[1], [0], [0], [1], [0, 0, 1, 1], [], []>} : vector<8x8xbf16>, vector<8x128xbf16>, vector<8x128xf32> -> vector<8x128xf32>
    %139 = arith.addf %135, %138 : vector<8x128xf32>
    %140 = vector.broadcast %5 : vector<1x128xf32> to vector<8x128xf32>
    %141 = arith.mulf %139, %140 : vector<8x128xf32>
    %cst_117 = arith.constant dense<0.000000e+00> : vector<8xf32>
    %142 = vector.multi_reduction <add>, %141, %cst_117 [1] : vector<8x128xf32> to vector<8xf32>
    %143 = vector.shape_cast %142 : vector<8xf32> to vector<8x1xf32>
    %144 = arith.mulf %141, %141 : vector<8x128xf32>
    %cst_118 = arith.constant dense<0.000000e+00> : vector<8xf32>
    %145 = vector.multi_reduction <add>, %144, %cst_118 [1] : vector<8x128xf32> to vector<8xf32>
    %146 = vector.shape_cast %145 : vector<8xf32> to vector<8x1xf32>
    %cst_119 = arith.constant 3.125000e-02 : f32
    %147 = vector.broadcast %cst_119 : f32 to vector<8x1xf32>
    %148 = arith.mulf %143, %147 : vector<8x1xf32>
    %cst_120 = arith.constant 3.125000e-02 : f32
    %149 = vector.broadcast %cst_120 : f32 to vector<8x1xf32>
    %150 = arith.mulf %146, %149 : vector<8x1xf32>
    %151 = arith.mulf %148, %148 : vector<8x1xf32>
    %152 = arith.subf %150, %151 : vector<8x1xf32>
    %cst_121 = arith.constant 0.000000e+00 : f32
    %153 = vector.broadcast %cst_121 : f32 to vector<8x1xf32>
    %154 = arith.maximumf %152, %153 : vector<8x1xf32>
    %cst_122 = arith.constant 9.99999974E-6 : f32
    %155 = vector.broadcast %cst_122 : f32 to vector<8x1xf32>
    %156 = arith.addf %154, %155 : vector<8x1xf32>
    %157 = math.rsqrt %156 : vector<8x1xf32>
    %158 = arith.mulf %113, %157 : vector<8x1xf32>
    %159 = vector.broadcast %158 : vector<8x1xf32> to vector<8x128xf32>
    %160 = arith.mulf %139, %159 : vector<8x128xf32>
    %161 = arith.mulf %148, %158 : vector<8x1xf32>
    %162 = arith.subf %115, %161 : vector<8x1xf32>
    %163 = vector.broadcast %162 : vector<8x1xf32> to vector<8x128xf32>
    %164 = arith.addf %160, %163 : vector<8x128xf32>
    %cst_123 = arith.constant 0.000000e+00 : f32
    %165 = vector.broadcast %cst_123 : f32 to vector<8x128xf32>
    %166 = arith.maximumf %164, %165 : vector<8x128xf32>
    %c1_i32_124 = arith.constant 1 : i32
    %167 = tpu.dynamic_rotate %166 by %c1_i32_124 dim 1 : vector<8x128xf32>, i32 -> vector<8x128xf32>
    %168 = vector.broadcast %3 : vector<1x128xf32> to vector<8x128xf32>
    %169 = arith.mulf %167, %168 : vector<8x128xf32>
    %170 = arith.truncf %169 : vector<8x128xf32> to vector<8x128xbf16>
    %c127_i32_125 = arith.constant 127 : i32
    %171 = tpu.dynamic_rotate %166 by %c127_i32_125 dim 1 : vector<8x128xf32>, i32 -> vector<8x128xf32>
    %172 = vector.broadcast %4 : vector<1x128xf32> to vector<8x128xf32>
    %173 = arith.mulf %171, %172 : vector<8x128xf32>
    %174 = arith.truncf %173 : vector<8x128xf32> to vector<8x128xbf16>
    %c0_126 = arith.constant 0 : index
    %c1_127 = arith.constant 1 : index
    %c1_128 = arith.constant 1 : index
    %c0_129 = arith.constant 0 : index
    %c0_130 = arith.constant 0 : index
    %c0_131 = arith.constant 0 : index
    %175 = vector.load %arg2[%c0_126, %c1_127, %c1_128, %c0_129, %c0_130, %c0_131] : memref<1x2x2x3x8x8xbf16, #tpu.memory_space<vmem>>, vector<1x1x1x1x8x8xbf16>
    %176 = vector.shape_cast %175 : vector<1x1x1x1x8x8xbf16> to vector<8x8xbf16>
    %cst_132 = arith.constant dense<0.000000e+00> : vector<8x128xf32>
    %177 = tpu.matmul %176, %170, %cst_132 {dimension_numbers = #tpu.dot_dimension_numbers<[1], [0], [0], [1], [0, 0, 1, 1], [], []>} : vector<8x8xbf16>, vector<8x128xbf16>, vector<8x128xf32> -> vector<8x128xf32>
    %c0_133 = arith.constant 0 : index
    %c1_134 = arith.constant 1 : index
    %c1_135 = arith.constant 1 : index
    %c1_136 = arith.constant 1 : index
    %c0_137 = arith.constant 0 : index
    %c0_138 = arith.constant 0 : index
    %178 = vector.load %arg2[%c0_133, %c1_134, %c1_135, %c1_136, %c0_137, %c0_138] : memref<1x2x2x3x8x8xbf16, #tpu.memory_space<vmem>>, vector<1x1x1x1x8x8xbf16>
    %179 = vector.shape_cast %178 : vector<1x1x1x1x8x8xbf16> to vector<8x8xbf16>
    %180 = arith.truncf %166 : vector<8x128xf32> to vector<8x128xbf16>
    %cst_139 = arith.constant dense<0.000000e+00> : vector<8x128xf32>
    %181 = tpu.matmul %179, %180, %cst_139 {dimension_numbers = #tpu.dot_dimension_numbers<[1], [0], [0], [1], [0, 0, 1, 1], [], []>} : vector<8x8xbf16>, vector<8x128xbf16>, vector<8x128xf32> -> vector<8x128xf32>
    %182 = arith.addf %177, %181 : vector<8x128xf32>
    %c0_140 = arith.constant 0 : index
    %c1_141 = arith.constant 1 : index
    %c1_142 = arith.constant 1 : index
    %c2_143 = arith.constant 2 : index
    %c0_144 = arith.constant 0 : index
    %c0_145 = arith.constant 0 : index
    %183 = vector.load %arg2[%c0_140, %c1_141, %c1_142, %c2_143, %c0_144, %c0_145] : memref<1x2x2x3x8x8xbf16, #tpu.memory_space<vmem>>, vector<1x1x1x1x8x8xbf16>
    %184 = vector.shape_cast %183 : vector<1x1x1x1x8x8xbf16> to vector<8x8xbf16>
    %cst_146 = arith.constant dense<0.000000e+00> : vector<8x128xf32>
    %185 = tpu.matmul %184, %174, %cst_146 {dimension_numbers = #tpu.dot_dimension_numbers<[1], [0], [0], [1], [0, 0, 1, 1], [], []>} : vector<8x8xbf16>, vector<8x128xbf16>, vector<8x128xf32> -> vector<8x128xf32>
    %186 = arith.addf %182, %185 : vector<8x128xf32>
    %187 = vector.broadcast %5 : vector<1x128xf32> to vector<8x128xf32>
    %188 = arith.mulf %186, %187 : vector<8x128xf32>
    %cst_147 = arith.constant dense<0.000000e+00> : vector<8xf32>
    %189 = vector.multi_reduction <add>, %188, %cst_147 [1] : vector<8x128xf32> to vector<8xf32>
    %190 = vector.shape_cast %189 : vector<8xf32> to vector<8x1xf32>
    %191 = arith.mulf %188, %188 : vector<8x128xf32>
    %cst_148 = arith.constant dense<0.000000e+00> : vector<8xf32>
    %192 = vector.multi_reduction <add>, %191, %cst_148 [1] : vector<8x128xf32> to vector<8xf32>
    %193 = vector.shape_cast %192 : vector<8xf32> to vector<8x1xf32>
    %cst_149 = arith.constant 3.125000e-02 : f32
    %194 = vector.broadcast %cst_149 : f32 to vector<8x1xf32>
    %195 = arith.mulf %190, %194 : vector<8x1xf32>
    %cst_150 = arith.constant 3.125000e-02 : f32
    %196 = vector.broadcast %cst_150 : f32 to vector<8x1xf32>
    %197 = arith.mulf %193, %196 : vector<8x1xf32>
    %198 = arith.mulf %195, %195 : vector<8x1xf32>
    %199 = arith.subf %197, %198 : vector<8x1xf32>
    %cst_151 = arith.constant 0.000000e+00 : f32
    %200 = vector.broadcast %cst_151 : f32 to vector<8x1xf32>
    %201 = arith.maximumf %199, %200 : vector<8x1xf32>
    %cst_152 = arith.constant 9.99999974E-6 : f32
    %202 = vector.broadcast %cst_152 : f32 to vector<8x1xf32>
    %203 = arith.addf %201, %202 : vector<8x1xf32>
    %204 = math.rsqrt %203 : vector<8x1xf32>
    %205 = arith.mulf %117, %204 : vector<8x1xf32>
    %206 = vector.broadcast %205 : vector<8x1xf32> to vector<8x128xf32>
    %207 = arith.mulf %186, %206 : vector<8x128xf32>
    %208 = arith.mulf %195, %205 : vector<8x1xf32>
    %209 = arith.subf %119, %208 : vector<8x1xf32>
    %210 = vector.broadcast %209 : vector<8x1xf32> to vector<8x128xf32>
    %211 = arith.addf %207, %210 : vector<8x128xf32>
    %212 = arith.addf %211, %111 : vector<8x128xf32>
    %cst_153 = arith.constant 0.000000e+00 : f32
    %213 = vector.broadcast %cst_153 : f32 to vector<8x128xf32>
    %214 = arith.maximumf %212, %213 : vector<8x128xf32>
    %215 = vector.broadcast %5 : vector<1x128xf32> to vector<8x128xf32>
    %216 = arith.mulf %214, %215 : vector<8x128xf32>
    %c0_154 = arith.constant 0 : index
    %c0_155 = arith.constant 0 : index
    %217 = vector.load %arg5[%c0_154, %c0_155] : memref<8x128xf32, #tpu.memory_space<vmem>>, vector<8x128xf32>
    tpu.vector_store %arg5[%c0_154, %c0_155], %216 {strides = array<i32>} : memref<8x128xf32, #tpu.memory_space<vmem>>, vector<8x128xf32>,
    return
  }
  func.func @transform_0(%arg0: i32) -> (i32, i32) {
    %c0_i32 = arith.constant 0 : i32
    %c0_i32_0 = arith.constant 0 : i32
    %c0_i32_1 = arith.constant 0 : i32
    return %c0_i32, %c0_i32_0 : i32, i32
  }
  func.func @transform_1(%arg0: i32) -> (i32, i32, i32, i32, i32, i32) {
    %c0_i32 = arith.constant 0 : i32
    %c0_i32_0 = arith.constant 0 : i32
    %c0_i32_1 = arith.constant 0 : i32
    %c0_i32_2 = arith.constant 0 : i32
    %c0_i32_3 = arith.constant 0 : i32
    %c0_i32_4 = arith.constant 0 : i32
    return %arg0, %c0_i32, %c0_i32_0, %c0_i32_1, %c0_i32_2, %c0_i32_3 : i32, i32, i32, i32, i32, i32
  }
  func.func @transform_2(%arg0: i32) -> (i32, i32, i32, i32) {
    %c0_i32 = arith.constant 0 : i32
    %c0_i32_0 = arith.constant 0 : i32
    %c0_i32_1 = arith.constant 0 : i32
    %c0_i32_2 = arith.constant 0 : i32
    return %arg0, %c0_i32, %c0_i32_0, %c0_i32_1 : i32, i32, i32, i32
  }
  func.func @transform_3(%arg0: i32) -> (i32, i32) {
    %c0_i32 = arith.constant 0 : i32
    %c0_i32_0 = arith.constant 0 : i32
    %c0_i32_1 = arith.constant 0 : i32
    return %c0_i32, %c0_i32_0 : i32, i32
  }
  func.func @transform_4(%arg0: i32) -> (i32, i32) {
    %c0_i32 = arith.constant 0 : i32
    %c0_i32_0 = arith.constant 0 : i32
    %c0_i32_1 = arith.constant 0 : i32
    return %c0_i32, %c0_i32_0 : i32, i32
  }
}

</mosaic_0001>

<llo_original>
// kernel: res_encoder_forward.2
$region0: #{res_encoder_forward.2}
  #allocation0 [shape = 'u32[]', space=smem, size = 0x4, offset = 0x4, fixed_abs, tag = 'smem constant byte address 0x4 - core index']
  #allocation1 [shape = 'u32[144,128]{1,0:T(1,128)}', space=vmem, size = 0x12000, scoped, tag = 'internal scratch']
  %s0 = inlined_call_operand.vmem [shape: f32[4,4,128], index: 0, kind: input, shape index: {}]
  %s1 = inlined_call_operand.vmem [shape: f32[7,8,4], index: 1, kind: input, shape index: {}]
  %s2 = inlined_call_operand.vmem [shape: f32[8,3], index: 2, kind: input, shape index: {}]
  %s3 = inlined_call_operand.vmem [shape: f32[3,128], index: 3, kind: input, shape index: {}]
  %s4 = inlined_call_operand.vmem [shape: f32[8,128], index: 4, kind: output, shape index: {}]
  %s5 = sld [smem:[#allocation0]]
  $region26: #{res_encoder_forward.2} parent=0
    _
  %s7 = ssub.s32 1, %s5
  %s8 = scalar_select 0, %s7, %s5
  // Predicated region
  $region2: #{res_encoder_forward.2} parent=0 // pred_check
    _
  $region3: #{res_encoder_forward.2} parent=0 // pred_check_branch
    %10 = sbr.rel (0) target = $region5
  $region4: #{res_encoder_forward.2} parent=0 // pred_region
    _
  $region5: #{res_encoder_forward.2} parent=0 // pred_fallthru
    _
  // Predicated region
  $region6: #{res_encoder_forward.2} parent=0 // pred_check
    _
  $region7: #{res_encoder_forward.2} parent=0 // pred_check_branch
    %12 = sbr.rel (0) target = $region9
  $region8: #{res_encoder_forward.2} parent=0 // pred_region
    _
  $region9: #{res_encoder_forward.2} parent=0 // pred_fallthru
    _
  // Predicated region
  $region10: #{res_encoder_forward.2} parent=0 // pred_check
    _
  $region11: #{res_encoder_forward.2} parent=0 // pred_check_branch
    %14 = sbr.rel (0) target = $region13
  $region12: #{res_encoder_forward.2} parent=0 // pred_region
    _
  $region13: #{res_encoder_forward.2} parent=0 // pred_fallthru
    _
  // Predicated region
  $region14: #{res_encoder_forward.2} parent=0 // pred_check
    _
  $region15: #{res_encoder_forward.2} parent=0 // pred_check_branch
    %16 = sbr.rel (0) target = $region17
  $region16: #{res_encoder_forward.2} parent=0 // pred_region
    _
  $region17: #{res_encoder_forward.2} parent=0 // pred_fallthru
    _
  %v17 = vld [vmem:[%s3] sm:$0x1]
  %v18 = vld [vmem:[%s3 + $0x1] sm:$0x1]
  %v19 = vld [vmem:[%s3 + $0x2] sm:$0x1]
  %v20 = vld [vmem:[%s0] sm:$0xf]
  %s21 = scalar_lea.vmem %s0, 4
  %v22 = vld [vmem:[%s21] sm:$0xf]
  %s23 = scalar_lea.vmem %s0, 8
  %v24 = vld [vmem:[%s23] sm:$0xf]
  %s25 = scalar_lea.vmem %s0, 12
  %v26 = vld [vmem:[%s25] sm:$0xf]
  %27 = vrot.lane.b32.xlu0 %v22, 1
  %v28 = vpop.permute.xlu0 %27
  %v29 = vlaneseq
  %v30 = vshrl.u32 %v29, 7
  %v31 = vsub.s32 0, %v30
  %v32 = vrot.slane %v17, %v31
  %v33 = vmul.f32 %v28, %v32
  %34 = vrot.lane.b32.xlu0 %v24, 1
  %v35 = vpop.permute.xlu0 %34
  %v36 = vmul.f32 %v35, %v32
  %37 = vrot.lane.b32.xlu0 %v26, 1
  %v38 = vpop.permute.xlu0 %37
  %v39 = vmul.f32 %v38, %v32
  %40 = vrot.lane.b32.xlu0 %v20, 127
  %v41 = vpop.permute.xlu0 %40
  %v42 = vlaneseq
  %v43 = vshrl.u32 %v42, 7
  %v44 = vsub.s32 0, %v43
  %v45 = vrot.slane %v18, %v44
  %v46 = vmul.f32 %v41, %v45
  %47 = vrot.lane.b32.xlu0 %v22, 127
  %v48 = vpop.permute.xlu0 %47
  %v49 = vmul.f32 %v48, %v45
  %v50 = vld [vmem:[%s1] sm:$0xff]
  %s51 = scalar_lea.vmem %s1, 8
  %v52 = vld [vmem:[%s51] sm:$0xff]
  %vm53 = vcmask 31744
  %v55 = vsel %vm53, %v52, 0
  %vm57 = vcmask 1043456
  %v59 = vsel %vm57, %v36, 0
  %61 = vmatprep.subr.mxu0 0.0
  %62 = vmatpush1.msra.mxu0 %v59
  %63 = vmatprep.subr.mxu0 0.0
  %64 = vmatpush1.msra.mxu0 0.0
  %65 = vmatprep.subr.mxu0 0.0
  %66 = vmatpush1.msra.mxu0 0.0
  %67 = vmatprep.subr.mxu0 0.0
  %68 = vmatpush1.msra.mxu0 0.0
  %69 = vmatprep.subr.mxu0 0.0
  %70 = vmatpush1.msra.mxu0 0.0
  %71 = vmatprep.subr.mxu0 0.0
  %72 = vmatpush1.msra.mxu0 0.0
  %73 = vmatprep.subr.mxu0 0.0
  %74 = vmatpush1.msra.mxu0 0.0
  %75 = vmatprep.subr.mxu0 0.0
  %76 = vmatpush1.msra.mxu0 0.0
  %77 = vmatprep.subr.mxu0 0.0
  %78 = vmatpush1.msra.mxu0 0.0
  %79 = vmatprep.subr.mxu0 0.0
  %80 = vmatpush1.msra.mxu0 0.0
  %81 = vmatprep.subr.mxu0 0.0
  %82 = vmatpush1.msra.mxu0 0.0
  %83 = vmatprep.subr.mxu0 0.0
  %84 = vmatpush1.msra.mxu0 0.0
  %85 = vmatprep.subr.mxu0 0.0
  %86 = vmatpush1.msra.mxu0 0.0
  %87 = vmatprep.subr.mxu0 0.0
  %88 = vmatpush1.msra.mxu0 0.0
  %89 = vmatprep.subr.mxu0 0.0
  %90 = vmatpush1.msra.mxu0 0.0
  %91 = vmatprep.subr.mxu0 0.0
  %92 = vmatpush1.msra.mxu0 0.0
  %93 = vmatprep.subr.mxu0 0.0
  %94 = vmatpush1.msra.mxu0 0.0
  %95 = vmatprep.subr.mxu0 0.0
  %96 = vmatpush1.msra.mxu0 0.0
  %97 = vmatprep.subr.mxu0 0.0
  %98 = vmatpush1.msra.mxu0 0.0
  %99 = vmatprep.subr.mxu0 0.0
  %100 = vmatpush1.msra.mxu0 0.0
  %101 = vmatprep.subr.mxu0 0.0
  %102 = vmatpush1.msra.mxu0 0.0
  %103 = vmatprep.subr.mxu0 0.0
  %104 = vmatpush1.msra.mxu0 0.0
  %105 = vmatprep.subr.mxu0 0.0
  %106 = vmatpush1.msra.mxu0 0.0
  %107 = vmatprep.subr.mxu0 0.0
  %108 = vmatpush1.msra.mxu0 0.0
  %109 = vmatprep.subr.mxu0 0.0
  %110 = vmatpush1.msra.mxu0 0.0
  %111 = vmatprep.subr.mxu0 0.0
  %112 = vmatpush1.msra.mxu0 0.0
  %113 = vmatprep.subr.mxu0 0.0
  %114 = vmatpush1.msra.mxu0 0.0
  %115 = vmatprep.subr.mxu0 0.0
  %116 = vmatpush1.msra.mxu0 0.0
  %117 = vmatprep.subr.mxu0 0.0
  %118 = vmatpush1.msra.mxu0 0.0
  %119 = vmatprep.subr.mxu0 0.0
  %120 = vmatpush1.msra.mxu0 0.0
  %121 = vmatprep.subr.mxu0 0.0
  %122 = vmatpush1.msra.mxu0 0.0
  %123 = vmatprep.subr.mxu0 0.0
  %124 = vmatpush1.msra.mxu0 0.0
  %125 = vmatprep.mubr.f32.mxu0 0.0
  %126 = vmatmul.mubr.f32.gmra.mrb[0].mxu0 %v55
  %v127 = vpop.f32.mrb[0].mxu0
  %v128 = vadd.f32 0.0, %v127
  %v129 = vpop.f32.mrb[0].mxu0
  %130 = vdwg.mxu0
  %v132 = vsel %vm53, %v50, 0
  %v135 = vsel %vm57, %v33, 0
  %137 = vmatprep.subr.mxu0 0.0
  %138 = vmatpush1.msra.mxu0 %v135
  %139 = vmatprep.subr.mxu0 0.0
  %140 = vmatpush1.msra.mxu0 0.0
  %141 = vmatprep.subr.mxu0 0.0
  %142 = vmatpush1.msra.mxu0 0.0
  %143 = vmatprep.subr.mxu0 0.0
  %144 = vmatpush1.msra.mxu0 0.0
  %145 = vmatprep.subr.mxu0 0.0
  %146 = vmatpush1.msra.mxu0 0.0
  %147 = vmatprep.subr.mxu0 0.0
  %148 = vmatpush1.msra.mxu0 0.0
  %149 = vmatprep.subr.mxu0 0.0
  %150 = vmatpush1.msra.mxu0 0.0
  %151 = vmatprep.subr.mxu0 0.0
  %152 = vmatpush1.msra.mxu0 0.0
  %153 = vmatprep.subr.mxu0 0.0
  %154 = vmatpush1.msra.mxu0 0.0
  %155 = vmatprep.subr.mxu0 0.0
  %156 = vmatpush1.msra.mxu0 0.0
  %157 = vmatprep.subr.mxu0 0.0
  %158 = vmatpush1.msra.mxu0 0.0
  %159 = vmatprep.subr.mxu0 0.0
  %160 = vmatpush1.msra.mxu0 0.0
  %161 = vmatprep.subr.mxu0 0.0
  %162 = vmatpush1.msra.mxu0 0.0
  %163 = vmatprep.subr.mxu0 0.0
  %164 = vmatpush1.msra.mxu0 0.0
  %165 = vmatprep.subr.mxu0 0.0
  %166 = vmatpush1.msra.mxu0 0.0
  %167 = vmatprep.subr.mxu0 0.0
  %168 = vmatpush1.msra.mxu0 0.0
  %169 = vmatprep.subr.mxu0 0.0
  %170 = vmatpush1.msra.mxu0 0.0
  %171 = vmatprep.subr.mxu0 0.0
  %172 = vmatpush1.msra.mxu0 0.0
  %173 = vmatprep.subr.mxu0 0.0
  %174 = vmatpush1.msra.mxu0 0.0
  %175 = vmatprep.subr.mxu0 0.0
  %176 = vmatpush1.msra.mxu0 0.0
  %177 = vmatprep.subr.mxu0 0.0
  %178 = vmatpush1.msra.mxu0 0.0
  %179 = vmatprep.subr.mxu0 0.0
  %180 = vmatpush1.msra.mxu0 0.0
  %181 = vmatprep.subr.mxu0 0.0
  %182 = vmatpush1.msra.mxu0 0.0
  %183 = vmatprep.subr.mxu0 0.0
  %184 = vmatpush1.msra.mxu0 0.0
  %185 = vmatprep.subr.mxu0 0.0
  %186 = vmatpush1.msra.mxu0 0.0
  %187 = vmatprep.subr.mxu0 0.0
  %188 = vmatpush1.msra.mxu0 0.0
  %189 = vmatprep.subr.mxu0 0.0
  %190 = vmatpush1.msra.mxu0 0.0
  %191 = vmatprep.subr.mxu0 0.0
  %192 = vmatpush1.msra.mxu0 0.0
  %193 = vmatprep.subr.mxu0 0.0
  %194 = vmatpush1.msra.mxu0 0.0
  %195 = vmatprep.subr.mxu0 0.0
  %196 = vmatpush1.msra.mxu0 0.0
  %197 = vmatprep.subr.mxu0 0.0
  %198 = vmatpush1.msra.mxu0 0.0
  %199 = vmatprep.subr.mxu0 0.0
  %200 = vmatpush1.msra.mxu0 0.0
  %201 = vmatprep.mubr.f32.mxu0 0.0
  %202 = vmatmul.mubr.f32.gmra.mrb[0].mxu0 %v132
  %v203 = vpop.f32.mrb[0].mxu0
  %v204 = vadd.f32 %v128, %v203
  %v205 = vpop.f32.mrb[0].mxu0
  %206 = vdwg.mxu0
  %s207 = scalar_lea.vmem %s1, 16
  %v208 = vld [vmem:[%s207] sm:$0xff]
  %v210 = vsel %vm53, %v208, 0
  %v213 = vsel %vm57, %v39, 0
  %215 = vmatprep.subr.mxu0 0.0
  %216 = vmatpush1.msra.mxu0 %v213
  %217 = vmatprep.subr.mxu0 0.0
  %218 = vmatpush1.msra.mxu0 0.0
  %219 = vmatprep.subr.mxu0 0.0
  %220 = vmatpush1.msra.mxu0 0.0
  %221 = vmatprep.subr.mxu0 0.0
  %222 = vmatpush1.msra.mxu0 0.0
  %223 = vmatprep.subr.mxu0 0.0
  %224 = vmatpush1.msra.mxu0 0.0
  %225 = vmatprep.subr.mxu0 0.0
  %226 = vmatpush1.msra.mxu0 0.0
  %227 = vmatprep.subr.mxu0 0.0
  %228 = vmatpush1.msra.mxu0 0.0
  %229 = vmatprep.subr.mxu0 0.0
  %230 = vmatpush1.msra.mxu0 0.0
  %231 = vmatprep.subr.mxu0 0.0
  %232 = vmatpush1.msra.mxu0 0.0
  %233 = vmatprep.subr.mxu0 0.0
  %234 = vmatpush1.msra.mxu0 0.0
  %235 = vmatprep.subr.mxu0 0.0
  %236 = vmatpush1.msra.mxu0 0.0
  %237 = vmatprep.subr.mxu0 0.0
  %238 = vmatpush1.msra.mxu0 0.0
  %239 = vmatprep.subr.mxu0 0.0
  %240 = vmatpush1.msra.mxu0 0.0
  %241 = vmatprep.subr.mxu0 0.0
  %242 = vmatpush1.msra.mxu0 0.0
  %243 = vmatprep.subr.mxu0 0.0
  %244 = vmatpush1.msra.mxu0 0.0
  %245 = vmatprep.subr.mxu0 0.0
  %246 = vmatpush1.msra.mxu0 0.0
  %247 = vmatprep.subr.mxu0 0.0
  %248 = vmatpush1.msra.mxu0 0.0
  %249 = vmatprep.subr.mxu0 0.0
  %250 = vmatpush1.msra.mxu0 0.0
  %251 = vmatprep.subr.mxu0 0.0
  %252 = vmatpush1.msra.mxu0 0.0
  %253 = vmatprep.subr.mxu0 0.0
  %254 = vmatpush1.msra.mxu0 0.0
  %255 = vmatprep.subr.mxu0 0.0
  %256 = vmatpush1.msra.mxu0 0.0
  %257 = vmatprep.subr.mxu0 0.0
  %258 = vmatpush1.msra.mxu0 0.0
  %259 = vmatprep.subr.mxu0 0.0
  %260 = vmatpush1.msra.mxu0 0.0
  %261 = vmatprep.subr.mxu0 0.0
  %262 = vmatpush1.msra.mxu0 0.0
  %263 = vmatprep.subr.mxu0 0.0
  %264 = vmatpush1.msra.mxu0 0.0
  %265 = vmatprep.subr.mxu0 0.0
  %266 = vmatpush1.msra.mxu0 0.0
  %267 = vmatprep.subr.mxu0 0.0
  %268 = vmatpush1.msra.mxu0 0.0
  %269 = vmatprep.subr.mxu0 0.0
  %270 = vmatpush1.msra.mxu0 0.0
  %271 = vmatprep.subr.mxu0 0.0
  %272 = vmatpush1.msra.mxu0 0.0
  %273 = vmatprep.subr.mxu0 0.0
  %274 = vmatpush1.msra.mxu0 0.0
  %275 = vmatprep.subr.mxu0 0.0
  %276 = vmatpush1.msra.mxu0 0.0
  %277 = vmatprep.subr.mxu0 0.0
  %278 = vmatpush1.msra.mxu0 0.0
  %279 = vmatprep.mubr.f32.mxu0 0.0
  %280 = vmatmul.mubr.f32.gmra.mrb[0].mxu0 %v210
  %v281 = vpop.f32.mrb[0].mxu0
  %v282 = vadd.f32 0.0, %v281
  %v283 = vpop.f32.mrb[0].mxu0
  %284 = vdwg.mxu0
  %v285 = vadd.f32 %v204, %v282
  %s286 = scalar_lea.vmem %s1, 24
  %v287 = vld [vmem:[%s286] sm:$0xff]
  %v289 = vsel %vm53, %v287, 0
  %v292 = vsel %vm57, %v20, 0
  %294 = vmatprep.subr.mxu0 0.0
  %295 = vmatpush1.msra.mxu0 %v292
  %296 = vmatprep.subr.mxu0 0.0
  %297 = vmatpush1.msra.mxu0 0.0
  %298 = vmatprep.subr.mxu0 0.0
  %299 = vmatpush1.msra.mxu0 0.0
  %300 = vmatprep.subr.mxu0 0.0
  %301 = vmatpush1.msra.mxu0 0.0
  %302 = vmatprep.subr.mxu0 0.0
  %303 = vmatpush1.msra.mxu0 0.0
  %304 = vmatprep.subr.mxu0 0.0
  %305 = vmatpush1.msra.mxu0 0.0
  %306 = vmatprep.subr.mxu0 0.0
  %307 = vmatpush1.msra.mxu0 0.0
  %308 = vmatprep.subr.mxu0 0.0
  %309 = vmatpush1.msra.mxu0 0.0
  %310 = vmatprep.subr.mxu0 0.0
  %311 = vmatpush1.msra.mxu0 0.0
  %312 = vmatprep.subr.mxu0 0.0
  %313 = vmatpush1.msra.mxu0 0.0
  %314 = vmatprep.subr.mxu0 0.0
  %315 = vmatpush1.msra.mxu0 0.0
  %316 = vmatprep.subr.mxu0 0.0
  %317 = vmatpush1.msra.mxu0 0.0
  %318 = vmatprep.subr.mxu0 0.0
  %319 = vmatpush1.msra.mxu0 0.0
  %320 = vmatprep.subr.mxu0 0.0
  %321 = vmatpush1.msra.mxu0 0.0
  %322 = vmatprep.subr.mxu0 0.0
  %323 = vmatpush1.msra.mxu0 0.0
  %324 = vmatprep.subr.mxu0 0.0
  %325 = vmatpush1.msra.mxu0 0.0
  %326 = vmatprep.subr.mxu0 0.0
  %327 = vmatpush1.msra.mxu0 0.0
  %328 = vmatprep.subr.mxu0 0.0
  %329 = vmatpush1.msra.mxu0 0.0
  %330 = vmatprep.subr.mxu0 0.0
  %331 = vmatpush1.msra.mxu0 0.0
  %332 = vmatprep.subr.mxu0 0.0
  %333 = vmatpush1.msra.mxu0 0.0
  %334 = vmatprep.subr.mxu0 0.0
  %335 = vmatpush1.msra.mxu0 0.0
  %336 = vmatprep.subr.mxu0 0.0
  %337 = vmatpush1.msra.mxu0 0.0
  %338 = vmatprep.subr.mxu0 0.0
  %339 = vmatpush1.msra.mxu0 0.0
  %340 = vmatprep.subr.mxu0 0.0
  %341 = vmatpush1.msra.mxu0 0.0
  %342 = vmatprep.subr.mxu0 0.0
  %343 = vmatpush1.msra.mxu0 0.0
  %344 = vmatprep.subr.mxu0 0.0
  %345 = vmatpush1.msra.mxu0 0.0
  %346 = vmatprep.subr.mxu0 0.0
  %347 = vmatpush1.msra.mxu0 0.0
  %348 = vmatprep.subr.mxu0 0.0
  %349 = vmatpush1.msra.mxu0 0.0
  %350 = vmatprep.subr.mxu0 0.0
  %351 = vmatpush1.msra.mxu0 0.0
  %352 = vmatprep.subr.mxu0 0.0
  %353 = vmatpush1.msra.mxu0 0.0
  %354 = vmatprep.subr.mxu0 0.0
  %355 = vmatpush1.msra.mxu0 0.0
  %356 = vmatprep.subr.mxu0 0.0
  %357 = vmatpush1.msra.mxu0 0.0
  %358 = vmatprep.mubr.f32.mxu0 0.0
  %359 = vmatmul.mubr.f32.gmra.mrb[0].mxu0 %v289
  %v360 = vpop.f32.mrb[0].mxu0
  %v361 = vadd.f32 0.0, %v360
  %v362 = vpop.f32.mrb[0].mxu0
  %363 = vdwg.mxu0
  %v364 = vadd.f32 %v285, %v361
  %s365 = scalar_lea.vmem %s1, 32
  %v366 = vld [vmem:[%s365] sm:$0xff]
  %v368 = vsel %vm53, %v366, 0
  %v371 = vsel %vm57, %v22, 0
  %373 = vmatprep.subr.mxu0 0.0
  %374 = vmatpush1.msra.mxu0 %v371
  %375 = vmatprep.subr.mxu0 0.0
  %376 = vmatpush1.msra.mxu0 0.0
  %377 = vmatprep.subr.mxu0 0.0
  %378 = vmatpush1.msra.mxu0 0.0
  %379 = vmatprep.subr.mxu0 0.0
  %380 = vmatpush1.msra.mxu0 0.0
  %381 = vmatprep.subr.mxu0 0.0
  %382 = vmatpush1.msra.mxu0 0.0
  %383 = vmatprep.subr.mxu0 0.0
  %384 = vmatpush1.msra.mxu0 0.0
  %385 = vmatprep.subr.mxu0 0.0
  %386 = vmatpush1.msra.mxu0 0.0
  %387 = vmatprep.subr.mxu0 0.0
  %388 = vmatpush1.msra.mxu0 0.0
  %389 = vmatprep.subr.mxu0 0.0
  %390 = vmatpush1.msra.mxu0 0.0
  %391 = vmatprep.subr.mxu0 0.0
  %392 = vmatpush1.msra.mxu0 0.0
  %393 = vmatprep.subr.mxu0 0.0
  %394 = vmatpush1.msra.mxu0 0.0
  %395 = vmatprep.subr.mxu0 0.0
  %396 = vmatpush1.msra.mxu0 0.0
  %397 = vmatprep.subr.mxu0 0.0
  %398 = vmatpush1.msra.mxu0 0.0
  %399 = vmatprep.subr.mxu0 0.0
  %400 = vmatpush1.msra.mxu0 0.0
  %401 = vmatprep.subr.mxu0 0.0
  %402 = vmatpush1.msra.mxu0 0.0
  %403 = vmatprep.subr.mxu0 0.0
  %404 = vmatpush1.msra.mxu0 0.0
  %405 = vmatprep.subr.mxu0 0.0
  %406 = vmatpush1.msra.mxu0 0.0
  %407 = vmatprep.subr.mxu0 0.0
  %408 = vmatpush1.msra.mxu0 0.0
  %409 = vmatprep.subr.mxu0 0.0
  %410 = vmatpush1.msra.mxu0 0.0
  %411 = vmatprep.subr.mxu0 0.0
  %412 = vmatpush1.msra.mxu0 0.0
  %413 = vmatprep.subr.mxu0 0.0
  %414 = vmatpush1.msra.mxu0 0.0
  %415 = vmatprep.subr.mxu0 0.0
  %416 = vmatpush1.msra.mxu0 0.0
  %417 = vmatprep.subr.mxu0 0.0
  %418 = vmatpush1.msra.mxu0 0.0
  %419 = vmatprep.subr.mxu0 0.0
  %420 = vmatpush1.msra.mxu0 0.0
  %421 = vmatprep.subr.mxu0 0.0
  %422 = vmatpush1.msra.mxu0 0.0
  %423 = vmatprep.subr.mxu0 0.0
  %424 = vmatpush1.msra.mxu0 0.0
  %425 = vmatprep.subr.mxu0 0.0
  %426 = vmatpush1.msra.mxu0 0.0
  %427 = vmatprep.subr.mxu0 0.0
  %428 = vmatpush1.msra.mxu0 0.0
  %429 = vmatprep.subr.mxu0 0.0
  %430 = vmatpush1.msra.mxu0 0.0
  %431 = vmatprep.subr.mxu0 0.0
  %432 = vmatpush1.msra.mxu0 0.0
  %433 = vmatprep.subr.mxu0 0.0
  %434 = vmatpush1.msra.mxu0 0.0
  %435 = vmatprep.subr.mxu0 0.0
  %436 = vmatpush1.msra.mxu0 0.0
  %437 = vmatprep.mubr.f32.mxu0 0.0
  %438 = vmatmul.mubr.f32.gmra.mrb[0].mxu0 %v368
  %v439 = vpop.f32.mrb[0].mxu0
  %v440 = vadd.f32 0.0, %v439
  %v441 = vpop.f32.mrb[0].mxu0
  %442 = vdwg.mxu0
  %v443 = vadd.f32 %v364, %v440
  %s444 = scalar_lea.vmem %s1, 40
  %v445 = vld [vmem:[%s444] sm:$0xff]
  %v447 = vsel %vm53, %v445, 0
  %v450 = vsel %vm57, %v24, 0
  %452 = vmatprep.subr.mxu0 0.0
  %453 = vmatpush1.msra.mxu0 %v450
  %454 = vmatprep.subr.mxu0 0.0
  %455 = vmatpush1.msra.mxu0 0.0
  %456 = vmatprep.subr.mxu0 0.0
  %457 = vmatpush1.msra.mxu0 0.0
  %458 = vmatprep.subr.mxu0 0.0
  %459 = vmatpush1.msra.mxu0 0.0
  %460 = vmatprep.subr.mxu0 0.0
  %461 = vmatpush1.msra.mxu0 0.0
  %462 = vmatprep.subr.mxu0 0.0
  %463 = vmatpush1.msra.mxu0 0.0
  %464 = vmatprep.subr.mxu0 0.0
  %465 = vmatpush1.msra.mxu0 0.0
  %466 = vmatprep.subr.mxu0 0.0
  %467 = vmatpush1.msra.mxu0 0.0
  %468 = vmatprep.subr.mxu0 0.0
  %469 = vmatpush1.msra.mxu0 0.0
  %470 = vmatprep.subr.mxu0 0.0
  %471 = vmatpush1.msra.mxu0 0.0
  %472 = vmatprep.subr.mxu0 0.0
  %473 = vmatpush1.msra.mxu0 0.0
  %474 = vmatprep.subr.mxu0 0.0
  %475 = vmatpush1.msra.mxu0 0.0
  %476 = vmatprep.subr.mxu0 0.0
  %477 = vmatpush1.msra.mxu0 0.0
  %478 = vmatprep.subr.mxu0 0.0
  %479 = vmatpush1.msra.mxu0 0.0
  %480 = vmatprep.subr.mxu0 0.0
  %481 = vmatpush1.msra.mxu0 0.0
  %482 = vmatprep.subr.mxu0 0.0
  %483 = vmatpush1.msra.mxu0 0.0
  %484 = vmatprep.subr.mxu0 0.0
  %485 = vmatpush1.msra.mxu0 0.0
  %486 = vmatprep.subr.mxu0 0.0
  %487 = vmatpush1.msra.mxu0 0.0
  %488 = vmatprep.subr.mxu0 0.0
  %489 = vmatpush1.msra.mxu0 0.0
  %490 = vmatprep.subr.mxu0 0.0
  %491 = vmatpush1.msra.mxu0 0.0
  %492 = vmatprep.subr.mxu0 0.0
  %493 = vmatpush1.msra.mxu0 0.0
  %494 = vmatprep.subr.mxu0 0.0
  %495 = vmatpush1.msra.mxu0 0.0
  %496 = vmatprep.subr.mxu0 0.0
  %497 = vmatpush1.msra.mxu0 0.0
  %498 = vmatprep.subr.mxu0 0.0
  %499 = vmatpush1.msra.mxu0 0.0
  %500 = vmatprep.subr.mxu0 0.0
  %501 = vmatpush1.msra.mxu0 0.0
  %502 = vmatprep.subr.mxu0 0.0
  %503 = vmatpush1.msra.mxu0 0.0
  %504 = vmatprep.subr.mxu0 0.0
  %505 = vmatpush1.msra.mxu0 0.0
  %506 = vmatprep.subr.mxu0 0.0
  %507 = vmatpush1.msra.mxu0 0.0
  %508 = vmatprep.subr.mxu0 0.0
  %509 = vmatpush1.msra.mxu0 0.0
  %510 = vmatprep.subr.mxu0 0.0
  %511 = vmatpush1.msra.mxu0 0.0
  %512 = vmatprep.subr.mxu0 0.0
  %513 = vmatpush1.msra.mxu0 0.0
  %514 = vmatprep.subr.mxu0 0.0
  %515 = vmatpush1.msra.mxu0 0.0
  %516 = vmatprep.mubr.f32.mxu0 0.0
  %517 = vmatmul.mubr.f32.gmra.mrb[0].mxu0 %v447
  %v518 = vpop.f32.mrb[0].mxu0
  %v519 = vadd.f32 0.0, %v518
  %v520 = vpop.f32.mrb[0].mxu0
  %521 = vdwg.mxu0
  %v522 = vadd.f32 %v443, %v519
  %s523 = scalar_lea.vmem %s1, 48
  %v524 = vld [vmem:[%s523] sm:$0xff]
  %v526 = vsel %vm53, %v524, 0
  %v529 = vsel %vm57, %v26, 0
  %531 = vmatprep.subr.mxu0 0.0
  %532 = vmatpush1.msra.mxu0 %v529
  %533 = vmatprep.subr.mxu0 0.0
  %534 = vmatpush1.msra.mxu0 0.0
  %535 = vmatprep.subr.mxu0 0.0
  %536 = vmatpush1.msra.mxu0 0.0
  %537 = vmatprep.subr.mxu0 0.0
  %538 = vmatpush1.msra.mxu0 0.0
  %539 = vmatprep.subr.mxu0 0.0
  %540 = vmatpush1.msra.mxu0 0.0
  %541 = vmatprep.subr.mxu0 0.0
  %542 = vmatpush1.msra.mxu0 0.0
  %543 = vmatprep.subr.mxu0 0.0
  %544 = vmatpush1.msra.mxu0 0.0
  %545 = vmatprep.subr.mxu0 0.0
  %546 = vmatpush1.msra.mxu0 0.0
  %547 = vmatprep.subr.mxu0 0.0
  %548 = vmatpush1.msra.mxu0 0.0
  %549 = vmatprep.subr.mxu0 0.0
  %550 = vmatpush1.msra.mxu0 0.0
  %551 = vmatprep.subr.mxu0 0.0
  %552 = vmatpush1.msra.mxu0 0.0
  %553 = vmatprep.subr.mxu0 0.0
  %554 = vmatpush1.msra.mxu0 0.0
  %555 = vmatprep.subr.mxu0 0.0
  %556 = vmatpush1.msra.mxu0 0.0
  %557 = vmatprep.subr.mxu0 0.0
  %558 = vmatpush1.msra.mxu0 0.0
  %559 = vmatprep.subr.mxu0 0.0
  %560 = vmatpush1.msra.mxu0 0.0
  %561 = vmatprep.subr.mxu0 0.0
  %562 = vmatpush1.msra.mxu0 0.0
  %563 = vmatprep.subr.mxu0 0.0
  %564 = vmatpush1.msra.mxu0 0.0
  %565 = vmatprep.subr.mxu0 0.0
  %566 = vmatpush1.msra.mxu0 0.0
  %567 = vmatprep.subr.mxu0 0.0
  %568 = vmatpush1.msra.mxu0 0.0
  %569 = vmatprep.subr.mxu0 0.0
  %570 = vmatpush1.msra.mxu0 0.0
  %571 = vmatprep.subr.mxu0 0.0
  %572 = vmatpush1.msra.mxu0 0.0
  %573 = vmatprep.subr.mxu0 0.0
  %574 = vmatpush1.msra.mxu0 0.0
  %575 = vmatprep.subr.mxu0 0.0
  %576 = vmatpush1.msra.mxu0 0.0
  %577 = vmatprep.subr.mxu0 0.0
  %578 = vmatpush1.msra.mxu0 0.0
  %579 = vmatprep.subr.mxu0 0.0
  %580 = vmatpush1.msra.mxu0 0.0
  %581 = vmatprep.subr.mxu0 0.0
  %582 = vmatpush1.msra.mxu0 0.0
  %583 = vmatprep.subr.mxu0 0.0
  %584 = vmatpush1.msra.mxu0 0.0
  %585 = vmatprep.subr.mxu0 0.0
  %586 = vmatpush1.msra.mxu0 0.0
  %587 = vmatprep.subr.mxu0 0.0
  %588 = vmatpush1.msra.mxu0 0.0
  %589 = vmatprep.subr.mxu0 0.0
  %590 = vmatpush1.msra.mxu0 0.0
  %591 = vmatprep.subr.mxu0 0.0
  %592 = vmatpush1.msra.mxu0 0.0
  %593 = vmatprep.subr.mxu0 0.0
  %594 = vmatpush1.msra.mxu0 0.0
  %595 = vmatprep.mubr.f32.mxu0 0.0
  %596 = vmatmul.mubr.f32.gmra.mrb[0].mxu0 %v526
  %v597 = vpop.f32.mrb[0].mxu0
  %v598 = vadd.f32 0.0, %v597
  %v599 = vpop.f32.mrb[0].mxu0
  %600 = vdwg.mxu0
  %v601 = vadd.f32 %v522, %v598
  %602 = vmatprep.subr.mxu0 0.0
  %603 = vmatpush1.msra.mxu0 %v292
  %604 = vmatprep.subr.mxu0 0.0
  %605 = vmatpush1.msra.mxu0 0.0
  %606 = vmatprep.subr.mxu0 0.0
  %607 = vmatpush1.msra.mxu0 0.0
  %608 = vmatprep.subr.mxu0 0.0
  %609 = vmatpush1.msra.mxu0 0.0
  %610 = vmatprep.subr.mxu0 0.0
  %611 = vmatpush1.msra.mxu0 0.0
  %612 = vmatprep.subr.mxu0 0.0
  %613 = vmatpush1.msra.mxu0 0.0
  %614 = vmatprep.subr.mxu0 0.0
  %615 = vmatpush1.msra.mxu0 0.0
  %616 = vmatprep.subr.mxu0 0.0
  %617 = vmatpush1.msra.mxu0 0.0
  %618 = vmatprep.subr.mxu0 0.0
  %619 = vmatpush1.msra.mxu0 0.0
  %620 = vmatprep.subr.mxu0 0.0
  %621 = vmatpush1.msra.mxu0 0.0
  %622 = vmatprep.subr.mxu0 0.0
  %623 = vmatpush1.msra.mxu0 0.0
  %624 = vmatprep.subr.mxu0 0.0
  %625 = vmatpush1.msra.mxu0 0.0
  %626 = vmatprep.subr.mxu0 0.0
  %627 = vmatpush1.msra.mxu0 0.0
  %628 = vmatprep.subr.mxu0 0.0
  %629 = vmatpush1.msra.mxu0 0.0
  %630 = vmatprep.subr.mxu0 0.0
  %631 = vmatpush1.msra.mxu0 0.0
  %632 = vmatprep.subr.mxu0 0.0
  %633 = vmatpush1.msra.mxu0 0.0
  %634 = vmatprep.subr.mxu0 0.0
  %635 = vmatpush1.msra.mxu0 0.0
  %636 = vmatprep.subr.mxu0 0.0
  %637 = vmatpush1.msra.mxu0 0.0
  %638 = vmatprep.subr.mxu0 0.0
  %639 = vmatpush1.msra.mxu0 0.0
  %640 = vmatprep.subr.mxu0 0.0
  %641 = vmatpush1.msra.mxu0 0.0
  %642 = vmatprep.subr.mxu0 0.0
  %643 = vmatpush1.msra.mxu0 0.0
  %644 = vmatprep.subr.mxu0 0.0
  %645 = vmatpush1.msra.mxu0 0.0
  %646 = vmatprep.subr.mxu0 0.0
  %647 = vmatpush1.msra.mxu0 0.0
  %648 = vmatprep.subr.mxu0 0.0
  %649 = vmatpush1.msra.mxu0 0.0
  %650 = vmatprep.subr.mxu0 0.0
  %651 = vmatpush1.msra.mxu0 0.0
  %652 = vmatprep.subr.mxu0 0.0
  %653 = vmatpush1.msra.mxu0 0.0
  %654 = vmatprep.subr.mxu0 0.0
  %655 = vmatpush1.msra.mxu0 0.0
  %656 = vmatprep.subr.mxu0 0.0
  %657 = vmatpush1.msra.mxu0 0.0
  %658 = vmatprep.subr.mxu0 0.0
  %659 = vmatpush1.msra.mxu0 0.0
  %660 = vmatprep.subr.mxu0 0.0
  %661 = vmatpush1.msra.mxu0 0.0
  %662 = vmatprep.subr.mxu0 0.0
  %663 = vmatpush1.msra.mxu0 0.0
  %664 = vmatprep.subr.mxu0 0.0
  %665 = vmatpush1.msra.mxu0 0.0
  %666 = vmatprep.mubr.f32.mxu0 0.0
  %667 = vmatmul.mubr.f32.gmra.mrb[0].mxu0 %v55
  %v668 = vpop.f32.mrb[0].mxu0
  %v669 = vadd.f32 0.0, %v668
  %v670 = vpop.f32.mrb[0].mxu0
  %671 = vdwg.mxu0
  %672 = vmatprep.subr.mxu0 0.0
  %673 = vmatpush1.msra.mxu0 %v213
  %674 = vmatprep.subr.mxu0 0.0
  %675 = vmatpush1.msra.mxu0 0.0
  %676 = vmatprep.subr.mxu0 0.0
  %677 = vmatpush1.msra.mxu0 0.0
  %678 = vmatprep.subr.mxu0 0.0
  %679 = vmatpush1.msra.mxu0 0.0
  %680 = vmatprep.subr.mxu0 0.0
  %681 = vmatpush1.msra.mxu0 0.0
  %682 = vmatprep.subr.mxu0 0.0
  %683 = vmatpush1.msra.mxu0 0.0
  %684 = vmatprep.subr.mxu0 0.0
  %685 = vmatpush1.msra.mxu0 0.0
  %686 = vmatprep.subr.mxu0 0.0
  %687 = vmatpush1.msra.mxu0 0.0
  %688 = vmatprep.subr.mxu0 0.0
  %689 = vmatpush1.msra.mxu0 0.0
  %690 = vmatprep.subr.mxu0 0.0
  %691 = vmatpush1.msra.mxu0 0.0
  %692 = vmatprep.subr.mxu0 0.0
  %693 = vmatpush1.msra.mxu0 0.0
  %694 = vmatprep.subr.mxu0 0.0
  %695 = vmatpush1.msra.mxu0 0.0
  %696 = vmatprep.subr.mxu0 0.0
  %697 = vmatpush1.msra.mxu0 0.0
  %698 = vmatprep.subr.mxu0 0.0
  %699 = vmatpush1.msra.mxu0 0.0
  %700 = vmatprep.subr.mxu0 0.0
  %701 = vmatpush1.msra.mxu0 0.0
  %702 = vmatprep.subr.mxu0 0.0
  %703 = vmatpush1.msra.mxu0 0.0
  %704 = vmatprep.subr.mxu0 0.0
  %705 = vmatpush1.msra.mxu0 0.0
  %706 = vmatprep.subr.mxu0 0.0
  %707 = vmatpush1.msra.mxu0 0.0
  %708 = vmatprep.subr.mxu0 0.0
  %709 = vmatpush1.msra.mxu0 0.0
  %710 = vmatprep.subr.mxu0 0.0
  %711 = vmatpush1.msra.mxu0 0.0
  %712 = vmatprep.subr.mxu0 0.0
  %713 = vmatpush1.msra.mxu0 0.0
  %714 = vmatprep.subr.mxu0 0.0
  %715 = vmatpush1.msra.mxu0 0.0
  %716 = vmatprep.subr.mxu0 0.0
  %717 = vmatpush1.msra.mxu0 0.0
  %718 = vmatprep.subr.mxu0 0.0
  %719 = vmatpush1.msra.mxu0 0.0
  %720 = vmatprep.subr.mxu0 0.0
  %721 = vmatpush1.msra.mxu0 0.0
  %722 = vmatprep.subr.mxu0 0.0
  %723 = vmatpush1.msra.mxu0 0.0
  %724 = vmatprep.subr.mxu0 0.0
  %725 = vmatpush1.msra.mxu0 0.0
  %726 = vmatprep.subr.mxu0 0.0
  %727 = vmatpush1.msra.mxu0 0.0
  %728 = vmatprep.subr.mxu0 0.0
  %729 = vmatpush1.msra.mxu0 0.0
  %730 = vmatprep.subr.mxu0 0.0
  %731 = vmatpush1.msra.mxu0 0.0
  %732 = vmatprep.subr.mxu0 0.0
  %733 = vmatpush1.msra.mxu0 0.0
  %734 = vmatprep.subr.mxu0 0.0
  %735 = vmatpush1.msra.mxu0 0.0
  %736 = vmatprep.mubr.f32.mxu0 0.0
  %737 = vmatmul.mubr.f32.gmra.mrb[0].mxu0 %v132
  %v738 = vpop.f32.mrb[0].mxu0
  %v739 = vadd.f32 %v669, %v738
  %v740 = vpop.f32.mrb[0].mxu0
  %741 = vdwg.mxu0
  %742 = vmatprep.subr.mxu0 0.0
  %743 = vmatpush1.msra.mxu0 %v371
  %744 = vmatprep.subr.mxu0 0.0
  %745 = vmatpush1.msra.mxu0 0.0
  %746 = vmatprep.subr.mxu0 0.0
  %747 = vmatpush1.msra.mxu0 0.0
  %748 = vmatprep.subr.mxu0 0.0
  %749 = vmatpush1.msra.mxu0 0.0
  %750 = vmatprep.subr.mxu0 0.0
  %751 = vmatpush1.msra.mxu0 0.0
  %752 = vmatprep.subr.mxu0 0.0
  %753 = vmatpush1.msra.mxu0 0.0
  %754 = vmatprep.subr.mxu0 0.0
  %755 = vmatpush1.msra.mxu0 0.0
  %756 = vmatprep.subr.mxu0 0.0
  %757 = vmatpush1.msra.mxu0 0.0
  %758 = vmatprep.subr.mxu0 0.0
  %759 = vmatpush1.msra.mxu0 0.0
  %760 = vmatprep.subr.mxu0 0.0
  %761 = vmatpush1.msra.mxu0 0.0
  %762 = vmatprep.subr.mxu0 0.0
  %763 = vmatpush1.msra.mxu0 0.0
  %764 = vmatprep.subr.mxu0 0.0
  %765 = vmatpush1.msra.mxu0 0.0
  %766 = vmatprep.subr.mxu0 0.0
  %767 = vmatpush1.msra.mxu0 0.0
  %768 = vmatprep.subr.mxu0 0.0
  %769 = vmatpush1.msra.mxu0 0.0
  %770 = vmatprep.subr.mxu0 0.0
  %771 = vmatpush1.msra.mxu0 0.0
  %772 = vmatprep.subr.mxu0 0.0
  %773 = vmatpush1.msra.mxu0 0.0
  %774 = vmatprep.subr.mxu0 0.0
  %775 = vmatpush1.msra.mxu0 0.0
  %776 = vmatprep.subr.mxu0 0.0
  %777 = vmatpush1.msra.mxu0 0.0
  %778 = vmatprep.subr.mxu0 0.0
  %779 = vmatpush1.msra.mxu0 0.0
  %780 = vmatprep.subr.mxu0 0.0
  %781 = vmatpush1.msra.mxu0 0.0
  %782 = vmatprep.subr.mxu0 0.0
  %783 = vmatpush1.msra.mxu0 0.0
  %784 = vmatprep.subr.mxu0 0.0
  %785 = vmatpush1.msra.mxu0 0.0
  %786 = vmatprep.subr.mxu0 0.0
  %787 = vmatpush1.msra.mxu0 0.0
  %788 = vmatprep.subr.mxu0 0.0
  %789 = vmatpush1.msra.mxu0 0.0
  %790 = vmatprep.subr.mxu0 0.0
  %791 = vmatpush1.msra.mxu0 0.0
  %792 = vmatprep.subr.mxu0 0.0
  %793 = vmatpush1.msra.mxu0 0.0
  %794 = vmatprep.subr.mxu0 0.0
  %795 = vmatpush1.msra.mxu0 0.0
  %796 = vmatprep.subr.mxu0 0.0
  %797 = vmatpush1.msra.mxu0 0.0
  %798 = vmatprep.subr.mxu0 0.0
  %799 = vmatpush1.msra.mxu0 0.0
  %800 = vmatprep.subr.mxu0 0.0
  %801 = vmatpush1.msra.mxu0 0.0
  %802 = vmatprep.subr.mxu0 0.0
  %803 = vmatpush1.msra.mxu0 0.0
  %804 = vmatprep.subr.mxu0 0.0
  %805 = vmatpush1.msra.mxu0 0.0
  %806 = vmatprep.mubr.f32.mxu0 0.0
  %807 = vmatmul.mubr.f32.gmra.mrb[0].mxu0 %v210
  %v808 = vpop.f32.mrb[0].mxu0
  %v809 = vadd.f32 0.0, %v808
  %v810 = vpop.f32.mrb[0].mxu0
  %811 = vdwg.mxu0
  %v812 = vadd.f32 %v739, %v809
  %813 = vmatprep.subr.mxu0 0.0
  %814 = vmatpush1.msra.mxu0 %v450
  %815 = vmatprep.subr.mxu0 0.0
  %816 = vmatpush1.msra.mxu0 0.0
  %817 = vmatprep.subr.mxu0 0.0
  %818 = vmatpush1.msra.mxu0 0.0
  %819 = vmatprep.subr.mxu0 0.0
  %820 = vmatpush1.msra.mxu0 0.0
  %821 = vmatprep.subr.mxu0 0.0
  %822 = vmatpush1.msra.mxu0 0.0
  %823 = vmatprep.subr.mxu0 0.0
  %824 = vmatpush1.msra.mxu0 0.0
  %825 = vmatprep.subr.mxu0 0.0
  %826 = vmatpush1.msra.mxu0 0.0
  %827 = vmatprep.subr.mxu0 0.0
  %828 = vmatpush1.msra.mxu0 0.0
  %829 = vmatprep.subr.mxu0 0.0
  %830 = vmatpush1.msra.mxu0 0.0
  %831 = vmatprep.subr.mxu0 0.0
  %832 = vmatpush1.msra.mxu0 0.0
  %833 = vmatprep.subr.mxu0 0.0
  %834 = vmatpush1.msra.mxu0 0.0
  %835 = vmatprep.subr.mxu0 0.0
  %836 = vmatpush1.msra.mxu0 0.0
  %837 = vmatprep.subr.mxu0 0.0
  %838 = vmatpush1.msra.mxu0 0.0
  %839 = vmatprep.subr.mxu0 0.0
  %840 = vmatpush1.msra.mxu0 0.0
  %841 = vmatprep.subr.mxu0 0.0
  %842 = vmatpush1.msra.mxu0 0.0
  %843 = vmatprep.subr.mxu0 0.0
  %844 = vmatpush1.msra.mxu0 0.0
  %845 = vmatprep.subr.mxu0 0.0
  %846 = vmatpush1.msra.mxu0 0.0
  %847 = vmatprep.subr.mxu0 0.0
  %848 = vmatpush1.msra.mxu0 0.0
  %849 = vmatprep.subr.mxu0 0.0
  %850 = vmatpush1.msra.mxu0 0.0
  %851 = vmatprep.subr.mxu0 0.0
  %852 = vmatpush1.msra.mxu0 0.0
  %853 = vmatprep.subr.mxu0 0.0
  %854 = vmatpush1.msra.mxu0 0.0
  %855 = vmatprep.subr.mxu0 0.0
  %856 = vmatpush1.msra.mxu0 0.0
  %857 = vmatprep.subr.mxu0 0.0
  %858 = vmatpush1.msra.mxu0 0.0
  %859 = vmatprep.subr.mxu0 0.0
  %860 = vmatpush1.msra.mxu0 0.0
  %861 = vmatprep.subr.mxu0 0.0
  %862 = vmatpush1.msra.mxu0 0.0
  %863 = vmatprep.subr.mxu0 0.0
  %864 = vmatpush1.msra.mxu0 0.0
  %865 = vmatprep.subr.mxu0 0.0
  %866 = vmatpush1.msra.mxu0 0.0
  %867 = vmatprep.subr.mxu0 0.0
  %868 = vmatpush1.msra.mxu0 0.0
  %869 = vmatprep.subr.mxu0 0.0
  %870 = vmatpush1.msra.mxu0 0.0
  %871 = vmatprep.subr.mxu0 0.0
  %872 = vmatpush1.msra.mxu0 0.0
  %873 = vmatprep.subr.mxu0 0.0
  %874 = vmatpush1.msra.mxu0 0.0
  %875 = vmatprep.subr.mxu0 0.0
  %876 = vmatpush1.msra.mxu0 0.0
  %877 = vmatprep.mubr.f32.mxu0 0.0
  %878 = vmatmul.mubr.f32.gmra.mrb[0].mxu0 %v289
  %v879 = vpop.f32.mrb[0].mxu0
  %v880 = vadd.f32 0.0, %v879
  %v881 = vpop.f32.mrb[0].mxu0
  %882 = vdwg.mxu0
  %v883 = vadd.f32 %v812, %v880
  %884 = vmatprep.subr.mxu0 0.0
  %885 = vmatpush1.msra.mxu0 %v529
  %886 = vmatprep.subr.mxu0 0.0
  %887 = vmatpush1.msra.mxu0 0.0
  %888 = vmatprep.subr.mxu0 0.0
  %889 = vmatpush1.msra.mxu0 0.0
  %890 = vmatprep.subr.mxu0 0.0
  %891 = vmatpush1.msra.mxu0 0.0
  %892 = vmatprep.subr.mxu0 0.0
  %893 = vmatpush1.msra.mxu0 0.0
  %894 = vmatprep.subr.mxu0 0.0
  %895 = vmatpush1.msra.mxu0 0.0
  %896 = vmatprep.subr.mxu0 0.0
  %897 = vmatpush1.msra.mxu0 0.0
  %898 = vmatprep.subr.mxu0 0.0
  %899 = vmatpush1.msra.mxu0 0.0
  %900 = vmatprep.subr.mxu0 0.0
  %901 = vmatpush1.msra.mxu0 0.0
  %902 = vmatprep.subr.mxu0 0.0
  %903 = vmatpush1.msra.mxu0 0.0
  %904 = vmatprep.subr.mxu0 0.0
  %905 = vmatpush1.msra.mxu0 0.0
  %906 = vmatprep.subr.mxu0 0.0
  %907 = vmatpush1.msra.mxu0 0.0
  %908 = vmatprep.subr.mxu0 0.0
  %909 = vmatpush1.msra.mxu0 0.0
  %910 = vmatprep.subr.mxu0 0.0
  %911 = vmatpush1.msra.mxu0 0.0
  %912 = vmatprep.subr.mxu0 0.0
  %913 = vmatpush1.msra.mxu0 0.0
  %914 = vmatprep.subr.mxu0 0.0
  %915 = vmatpush1.msra.mxu0 0.0
  %916 = vmatprep.subr.mxu0 0.0
  %917 = vmatpush1.msra.mxu0 0.0
  %918 = vmatprep.subr.mxu0 0.0
  %919 = vmatpush1.msra.mxu0 0.0
  %920 = vmatprep.subr.mxu0 0.0
  %921 = vmatpush1.msra.mxu0 0.0
  %922 = vmatprep.subr.mxu0 0.0
  %923 = vmatpush1.msra.mxu0 0.0
  %924 = vmatprep.subr.mxu0 0.0
  %925 = vmatpush1.msra.mxu0 0.0
  %926 = vmatprep.subr.mxu0 0.0
  %927 = vmatpush1.msra.mxu0 0.0
  %928 = vmatprep.subr.mxu0 0.0
  %929 = vmatpush1.msra.mxu0 0.0
  %930 = vmatprep.subr.mxu0 0.0
  %931 = vmatpush1.msra.mxu0 0.0
  %932 = vmatprep.subr.mxu0 0.0
  %933 = vmatpush1.msra.mxu0 0.0
  %934 = vmatprep.subr.mxu0 0.0
  %935 = vmatpush1.msra.mxu0 0.0
  %936 = vmatprep.subr.mxu0 0.0
  %937 = vmatpush1.msra.mxu0 0.0
  %938 = vmatprep.subr.mxu0 0.0
  %939 = vmatpush1.msra.mxu0 0.0
  %940 = vmatprep.subr.mxu0 0.0
  %941 = vmatpush1.msra.mxu0 0.0
  %942 = vmatprep.subr.mxu0 0.0
  %943 = vmatpush1.msra.mxu0 0.0
  %944 = vmatprep.subr.mxu0 0.0
  %945 = vmatpush1.msra.mxu0 0.0
  %946 = vmatprep.subr.mxu0 0.0
  %947 = vmatpush1.msra.mxu0 0.0
  %948 = vmatprep.mubr.f32.mxu0 0.0
  %949 = vmatmul.mubr.f32.gmra.mrb[0].mxu0 %v368
  %v950 = vpop.f32.mrb[0].mxu0
  %v951 = vadd.f32 0.0, %v950
  %v952 = vpop.f32.mrb[0].mxu0
  %953 = vdwg.mxu0
  %v954 = vadd.f32 %v883, %v951
  %v956 = vsel %vm57, %v46, 0
  %958 = vmatprep.subr.mxu0 0.0
  %959 = vmatpush1.msra.mxu0 %v956
  %960 = vmatprep.subr.mxu0 0.0
  %961 = vmatpush1.msra.mxu0 0.0
  %962 = vmatprep.subr.mxu0 0.0
  %963 = vmatpush1.msra.mxu0 0.0
  %964 = vmatprep.subr.mxu0 0.0
  %965 = vmatpush1.msra.mxu0 0.0
  %966 = vmatprep.subr.mxu0 0.0
  %967 = vmatpush1.msra.mxu0 0.0
  %968 = vmatprep.subr.mxu0 0.0
  %969 = vmatpush1.msra.mxu0 0.0
  %970 = vmatprep.subr.mxu0 0.0
  %971 = vmatpush1.msra.mxu0 0.0
  %972 = vmatprep.subr.mxu0 0.0
  %973 = vmatpush1.msra.mxu0 0.0
  %974 = vmatprep.subr.mxu0 0.0
  %975 = vmatpush1.msra.mxu0 0.0
  %976 = vmatprep.subr.mxu0 0.0
  %977 = vmatpush1.msra.mxu0 0.0
  %978 = vmatprep.subr.mxu0 0.0
  %979 = vmatpush1.msra.mxu0 0.0
  %980 = vmatprep.subr.mxu0 0.0
  %981 = vmatpush1.msra.mxu0 0.0
  %982 = vmatprep.subr.mxu0 0.0
  %983 = vmatpush1.msra.mxu0 0.0
  %984 = vmatprep.subr.mxu0 0.0
  %985 = vmatpush1.msra.mxu0 0.0
  %986 = vmatprep.subr.mxu0 0.0
  %987 = vmatpush1.msra.mxu0 0.0
  %988 = vmatprep.subr.mxu0 0.0
  %989 = vmatpush1.msra.mxu0 0.0
  %990 = vmatprep.subr.mxu0 0.0
  %991 = vmatpush1.msra.mxu0 0.0
  %992 = vmatprep.subr.mxu0 0.0
  %993 = vmatpush1.msra.mxu0 0.0
  %994 = vmatprep.subr.mxu0 0.0
  %995 = vmatpush1.msra.mxu0 0.0
  %996 = vmatprep.subr.mxu0 0.0
  %997 = vmatpush1.msra.mxu0 0.0
  %998 = vmatprep.subr.mxu0 0.0
  %999 = vmatpush1.msra.mxu0 0.0
  %1000 = vmatprep.subr.mxu0 0.0
  %1001 = vmatpush1.msra.mxu0 0.0
  %1002 = vmatprep.subr.mxu0 0.0
  %1003 = vmatpush1.msra.mxu0 0.0
  %1004 = vmatprep.subr.mxu0 0.0
  %1005 = vmatpush1.msra.mxu0 0.0
  %1006 = vmatprep.subr.mxu0 0.0
  %1007 = vmatpush1.msra.mxu0 0.0
  %1008 = vmatprep.subr.mxu0 0.0
  %1009 = vmatpush1.msra.mxu0 0.0
  %1010 = vmatprep.subr.mxu0 0.0
  %1011 = vmatpush1.msra.mxu0 0.0
  %1012 = vmatprep.subr.mxu0 0.0
  %1013 = vmatpush1.msra.mxu0 0.0
  %1014 = vmatprep.subr.mxu0 0.0
  %1015 = vmatpush1.msra.mxu0 0.0
  %1016 = vmatprep.subr.mxu0 0.0
  %1017 = vmatpush1.msra.mxu0 0.0
  %1018 = vmatprep.subr.mxu0 0.0
  %1019 = vmatpush1.msra.mxu0 0.0
  %1020 = vmatprep.subr.mxu0 0.0
  %1021 = vmatpush1.msra.mxu0 0.0
  %1022 = vmatprep.mubr.f32.mxu0 0.0
  %1023 = vmatmul.mubr.f32.gmra.mrb[0].mxu0 %v447
  %v1024 = vpop.f32.mrb[0].mxu0
  %v1025 = vadd.f32 0.0, %v1024
  %v1026 = vpop.f32.mrb[0].mxu0
  %1027 = vdwg.mxu0
  %v1028 = vadd.f32 %v954, %v1025
  %v1030 = vsel %vm57, %v49, 0
  %1032 = vmatprep.subr.mxu0 0.0
  %1033 = vmatpush1.msra.mxu0 %v1030
  %1034 = vmatprep.subr.mxu0 0.0
  %1035 = vmatpush1.msra.mxu0 0.0
  %1036 = vmatprep.subr.mxu0 0.0
  %1037 = vmatpush1.msra.mxu0 0.0
  %1038 = vmatprep.subr.mxu0 0.0
  %1039 = vmatpush1.msra.mxu0 0.0
  %1040 = vmatprep.subr.mxu0 0.0
  %1041 = vmatpush1.msra.mxu0 0.0
  %1042 = vmatprep.subr.mxu0 0.0
  %1043 = vmatpush1.msra.mxu0 0.0
  %1044 = vmatprep.subr.mxu0 0.0
  %1045 = vmatpush1.msra.mxu0 0.0
  %1046 = vmatprep.subr.mxu0 0.0
  %1047 = vmatpush1.msra.mxu0 0.0
  %1048 = vmatprep.subr.mxu0 0.0
  %1049 = vmatpush1.msra.mxu0 0.0
  %1050 = vmatprep.subr.mxu0 0.0
  %1051 = vmatpush1.msra.mxu0 0.0
  %1052 = vmatprep.subr.mxu0 0.0
  %1053 = vmatpush1.msra.mxu0 0.0
  %1054 = vmatprep.subr.mxu0 0.0
  %1055 = vmatpush1.msra.mxu0 0.0
  %1056 = vmatprep.subr.mxu0 0.0
  %1057 = vmatpush1.msra.mxu0 0.0
  %1058 = vmatprep.subr.mxu0 0.0
  %1059 = vmatpush1.msra.mxu0 0.0
  %1060 = vmatprep.subr.mxu0 0.0
  %1061 = vmatpush1.msra.mxu0 0.0
  %1062 = vmatprep.subr.mxu0 0.0
  %1063 = vmatpush1.msra.mxu0 0.0
  %1064 = vmatprep.subr.mxu0 0.0
  %1065 = vmatpush1.msra.mxu0 0.0
  %1066 = vmatprep.subr.mxu0 0.0
  %1067 = vmatpush1.msra.mxu0 0.0
  %1068 = vmatprep.subr.mxu0 0.0
  %1069 = vmatpush1.msra.mxu0 0.0
  %1070 = vmatprep.subr.mxu0 0.0
  %1071 = vmatpush1.msra.mxu0 0.0
  %1072 = vmatprep.subr.mxu0 0.0
  %1073 = vmatpush1.msra.mxu0 0.0
  %1074 = vmatprep.subr.mxu0 0.0
  %1075 = vmatpush1.msra.mxu0 0.0
  %1076 = vmatprep.subr.mxu0 0.0
  %1077 = vmatpush1.msra.mxu0 0.0
  %1078 = vmatprep.subr.mxu0 0.0
  %1079 = vmatpush1.msra.mxu0 0.0
  %1080 = vmatprep.subr.mxu0 0.0
  %1081 = vmatpush1.msra.mxu0 0.0
  %1082 = vmatprep.subr.mxu0 0.0
  %1083 = vmatpush1.msra.mxu0 0.0
  %1084 = vmatprep.subr.mxu0 0.0
  %1085 = vmatpush1.msra.mxu0 0.0
  %1086 = vmatprep.subr.mxu0 0.0
  %1087 = vmatpush1.msra.mxu0 0.0
  %1088 = vmatprep.subr.mxu0 0.0
  %1089 = vmatpush1.msra.mxu0 0.0
  %1090 = vmatprep.subr.mxu0 0.0
  %1091 = vmatpush1.msra.mxu0 0.0
  %1092 = vmatprep.subr.mxu0 0.0
  %1093 = vmatpush1.msra.mxu0 0.0
  %1094 = vmatprep.subr.mxu0 0.0
  %1095 = vmatpush1.msra.mxu0 0.0
  %1096 = vmatprep.mubr.f32.mxu0 0.0
  %1097 = vmatmul.mubr.f32.gmra.mrb[0].mxu0 %v526
  %v1098 = vpop.f32.mrb[0].mxu0
  %v1099 = vadd.f32 0.0, %v1098
  %v1100 = vpop.f32.mrb[0].mxu0
  %1101 = vdwg.mxu0
  %v1102 = vadd.f32 %v1028, %v1099
  %v1103 = vld [vmem:[%s2] sm:$0xff]
  %1105 = vset.pattern.permute.xlu0 0
  %1106 = vperm.xlu0 %1105, %v1103
  %v1107 = vpop.permute.xlu0 %1106
  %v1109 = vadd.f32 %v601, %v1107
  %v1110 = vmax.f32 %v1109, 0.0
  %v1111 = vadd.f32 %v1102, %v1107
  %v1112 = vmax.f32 %v1111, 0.0
  %v1113 = vlaneseq
  %v1114 = vshrl.u32 %v1113, 7
  %v1115 = vsub.s32 0, %v1114
  %v1116 = vrot.slane %v19, %v1115
  %v1117 = vmul.f32 %v1110, %v1116
  %v1118 = vmul.f32 %v1112, %v1116
  %1119 = vadd.xlane.f32.xlu0 %v1117
  %v1120 = vpop.xlane.xlu0 %1119
  %1121 = vadd.xlane.f32.xlu0 %v1118
  %v1122 = vpop.xlane.xlu0 %1121
  %v1123 = vadd.f32 %v1120, %v1122
  %v1124 = vmul.f32 %v1117, %v1117
  %1125 = vadd.xlane.f32.xlu0 %v1124
  %v1126 = vpop.xlane.xlu0 %1125
  %v1127 = vmul.f32 %v1118, %v1118
  %1128 = vadd.xlane.f32.xlu0 %v1127
  %v1129 = vpop.xlane.xlu0 %1128
  %v1130 = vadd.f32 %v1126, %v1129
  %v1131 = vmul.f32 %v1123, 0.015625
  %v1132 = vmul.f32 %v1130, 0.015625
  %v1133 = vmul.f32 %v1131, %v1131
  %v1134 = vsub.f32 %v1132, %v1133
  %v1135 = vmax.f32 %v1134, 0.0
  %v1136 = vadd.f32 %v1135, 1e-05
  %v1137 = vrsqrt.pop %v1136
  %v1138 = vmul.f32 %v1103, %v1137
  %v1139 = vmul.f32 %v1131, %v1138
  %1141 = vrot.lane.b32.xlu0 %v1139, 1
  %v1142 = vpop.permute.xlu0 %1141
  %v1144 = vsub.f32 %v1103, %v1142
  %1146 = vset.pattern.permute.xlu0 1
  %1147 = vperm.xlu0 %1146, %v1138
  %v1148 = vpop.permute.xlu0 %1147
  %v1150 = vmul.f32 %v1110, %v1148
  %1152 = vset.pattern.permute.xlu0 2
  %1153 = vperm.xlu0 %1152, %v1144
  %v1154 = vpop.permute.xlu0 %1153
  %v1156 = vadd.f32 %v1150, %v1154
  %v1157 = vmul.f32 %v1112, %v1148
  %v1158 = vadd.f32 %v1157, %v1154
  %1159 = vrot.lane.b32.xlu0 %v1158, 1
  %v1160 = vpop.permute.xlu0 %1159
  %vm1161 = vcmp.gt.f32.partialorder %v17, 0.5
  %v1162 = vsel %vm1161, 1, 0
  %v1163 = vlaneseq
  %v1164 = vshrl.u32 %v1163, 7
  %v1165 = vsub.s32 0, %v1164
  %v1166 = vrot.slane %v1162, %v1165
  %vm1167 = vcmp.eq.s32.totalorder %v1166, 1
  %v1168 = vsel %vm1167, %v1160, -3.4028235e+38
  %v1169 = vmax.f32 %v1168, %v1156
  %v1170 = vmax.f32 %v1169, %v1158
  %v1171 = vmul.f32 %v1170, %v1116
  %1172 = vst [vmem:[%s4] sm:$0xff] %v1171
  // Predicated region
  $region18: #{res_encoder_forward.2} parent=0 // pred_check
    _
  $region19: #{res_encoder_forward.2} parent=0 // pred_check_branch
    %1174 = sbr.rel (0) target = $region21
  $region20: #{res_encoder_forward.2} parent=0 // pred_region
    _
  $region21: #{res_encoder_forward.2} parent=0 // pred_fallthru
    _
  // Predicated region
  $region22: #{res_encoder_forward.2} parent=0 // pred_check
    _
  $region23: #{res_encoder_forward.2} parent=0 // pred_check_branch
    %1176 = sbr.rel (0) target = $region25
  $region24: #{res_encoder_forward.2} parent=0 // pred_region
    _
  $region25: #{res_encoder_forward.2} parent=0 // pred_fallthru
    _

// kernel: res_encoder_forward.3
$region0: #{res_encoder_forward.3}
  #allocation0 [shape = 'u32[]', space=smem, size = 0x4, offset = 0x4, fixed_abs, tag = 'smem constant byte address 0x4 - core index']
  #allocation1 [shape = 'u32[144,128]{1,0:T(1,128)}', space=vmem, size = 0x12000, scoped, tag = 'internal scratch']
  %s0 = inlined_call_operand.vmem [shape: f32[8,128], index: 0, kind: input, shape index: {}]
  %s1 = inlined_call_operand.vmem [shape: bf16[1,2,2,3,8,8], index: 1, kind: input, shape index: {}]
  %s2 = inlined_call_operand.vmem [shape: f32[1,2,8,4], index: 2, kind: input, shape index: {}]
  %s3 = inlined_call_operand.vmem [shape: f32[3,128], index: 3, kind: input, shape index: {}]
  %s4 = inlined_call_operand.vmem [shape: f32[8,128], index: 4, kind: output, shape index: {}]
  %s5 = sld [smem:[#allocation0]]
  $region30: #{res_encoder_forward.3} parent=0
    _
  %s7 = ssub.s32 1, %s5
  %s8 = scalar_select 0, %s7, %s5
  // Predicated region
  $region2: #{res_encoder_forward.3} parent=0 // pred_check
    _
  $region3: #{res_encoder_forward.3} parent=0 // pred_check_branch
    %10 = sbr.rel (0) target = $region5
  $region4: #{res_encoder_forward.3} parent=0 // pred_region
    _
  $region5: #{res_encoder_forward.3} parent=0 // pred_fallthru
    _
  // Predicated region
  $region6: #{res_encoder_forward.3} parent=0 // pred_check
    _
  $region7: #{res_encoder_forward.3} parent=0 // pred_check_branch
    %12 = sbr.rel (0) target = $region9
  $region8: #{res_encoder_forward.3} parent=0 // pred_region
    _
  $region9: #{res_encoder_forward.3} parent=0 // pred_fallthru
    _
  // Predicated region
  $region10: #{res_encoder_forward.3} parent=0 // pred_check
    _
  $region11: #{res_encoder_forward.3} parent=0 // pred_check_branch
    %14 = sbr.rel (0) target = $region13
  $region12: #{res_encoder_forward.3} parent=0 // pred_region
    _
  $region13: #{res_encoder_forward.3} parent=0 // pred_fallthru
    _
  // Predicated region
  $region14: #{res_encoder_forward.3} parent=0 // pred_check
    _
  $region15: #{res_encoder_forward.3} parent=0 // pred_check_branch
    %16 = sbr.rel (0) target = $region17
  $region16: #{res_encoder_forward.3} parent=0 // pred_region
    _
  $region17: #{res_encoder_forward.3} parent=0 // pred_fallthru
    _
  %p18 = scmp.eq.s32.totalorder 0, 0
  // Predicated region
  $region18: #{res_encoder_forward.3} parent=0 // pred_check
    %p19 = pneg %p18
  $region19: #{res_encoder_forward.3} parent=0 // pred_check_branch
    %21 = sbr.rel (%p19) target = $region21
  $region20: #{res_encoder_forward.3} parent=0 // pred_region
    %v22 = vld [vmem:[%s0] sm:$0xff]
    %23 = vst [vmem:[%s4] sm:$0xff] %v22
  $region21: #{res_encoder_forward.3} parent=0 // pred_fallthru
    _
  %v24 = vld [vmem:[%s3] sm:$0x1]
  %v25 = vld [vmem:[%s3 + $0x1] sm:$0x1]
  %v26 = vld [vmem:[%s3 + $0x2] sm:$0x1]
  %v27 = vld [vmem:[%s4] sm:$0xff]
  %v28 = vld [vmem:[%s2] sm:$0xff]
  %29 = vrot.lane.b32.xlu0 %v27, 1
  %v30 = vpop.permute.xlu0 %29
  %v31 = vlaneseq
  %v32 = vshrl.u32 %v31, 7
  %v33 = vsub.s32 0, %v32
  %v34 = vrot.slane %v24, %v33
  %v35 = vmul.f32 %v30, %v34
  %v36 = vpack.c.bf16 %v35, %v35
  %37 = vrot.lane.b32.xlu0 %v27, 127
  %v38 = vpop.permute.xlu0 %37
  %v39 = vlaneseq
  %v40 = vshrl.u32 %v39, 7
  %v41 = vsub.s32 0, %v40
  %v42 = vrot.slane %v25, %v41
  %v43 = vmul.f32 %v38, %v42
  %v44 = vpack.c.bf16 %v43, %v43
  %v45 = vld [vmem:[%s1] sm:$0xf]
  %s46 = scalar_lea.vmem %s1, 4
  %v47 = vld [vmem:[%s46] sm:$0xf]
  %v48 = vpack.c.bf16 %v27, %v27
  %vm49 = vcmask 64512
  %v51 = vsel %vm49, %v47, 0
  %vm53 = vcmask 1043456
  %v55 = vsel %vm53, %v48, 0
  %57 = vmatprep.subr.bf16.mxu0 0
  %58 = vmatpush1.bf16.msra.mxu0 %v55
  %59 = vmatprep.subr.bf16.mxu0 0
  %60 = vmatpush1.bf16.msra.mxu0 0
  %61 = vmatprep.subr.bf16.mxu0 0
  %62 = vmatpush1.bf16.msra.mxu0 0
  %63 = vmatprep.subr.bf16.mxu0 0
  %64 = vmatpush1.bf16.msra.mxu0 0
  %65 = vmatprep.subr.bf16.mxu0 0
  %66 = vmatpush1.bf16.msra.mxu0 0
  %67 = vmatprep.subr.bf16.mxu0 0
  %68 = vmatpush1.bf16.msra.mxu0 0
  %69 = vmatprep.subr.bf16.mxu0 0
  %70 = vmatpush1.bf16.msra.mxu0 0
  %71 = vmatprep.subr.bf16.mxu0 0
  %72 = vmatpush1.bf16.msra.mxu0 0
  %73 = vmatprep.subr.bf16.mxu0 0
  %74 = vmatpush1.bf16.msra.mxu0 0
  %75 = vmatprep.subr.bf16.mxu0 0
  %76 = vmatpush1.bf16.msra.mxu0 0
  %77 = vmatprep.subr.bf16.mxu0 0
  %78 = vmatpush1.bf16.msra.mxu0 0
  %79 = vmatprep.subr.bf16.mxu0 0
  %80 = vmatpush1.bf16.msra.mxu0 0
  %81 = vmatprep.subr.bf16.mxu0 0
  %82 = vmatpush1.bf16.msra.mxu0 0
  %83 = vmatprep.subr.bf16.mxu0 0
  %84 = vmatpush1.bf16.msra.mxu0 0
  %85 = vmatprep.subr.bf16.mxu0 0
  %86 = vmatpush1.bf16.msra.mxu0 0
  %87 = vmatprep.subr.bf16.mxu0 0
  %88 = vmatpush1.bf16.msra.mxu0 0
  %89 = vmatprep.mubr.bf16.mxu0 0
  %90 = vmatmul.mubr.bf16.gmra.mrb[0].mxu0 %v51
  %v91 = vpop.f32.mrb[0].mxu0
  %v92 = vadd.f32 0.0, %v91
  %v93 = vpop.f32.mrb[0].mxu0
  %v94 = vpop.f32.mrb[0].mxu0
  %v95 = vpop.f32.mrb[0].mxu0
  %96 = vdwg.mxu0
  %v98 = vsel %vm49, %v45, 0
  %v101 = vsel %vm53, %v36, 0
  %103 = vmatprep.subr.bf16.mxu0 0
  %104 = vmatpush1.bf16.msra.mxu0 %v101
  %105 = vmatprep.subr.bf16.mxu0 0
  %106 = vmatpush1.bf16.msra.mxu0 0
  %107 = vmatprep.subr.bf16.mxu0 0
  %108 = vmatpush1.bf16.msra.mxu0 0
  %109 = vmatprep.subr.bf16.mxu0 0
  %110 = vmatpush1.bf16.msra.mxu0 0
  %111 = vmatprep.subr.bf16.mxu0 0
  %112 = vmatpush1.bf16.msra.mxu0 0
  %113 = vmatprep.subr.bf16.mxu0 0
  %114 = vmatpush1.bf16.msra.mxu0 0
  %115 = vmatprep.subr.bf16.mxu0 0
  %116 = vmatpush1.bf16.msra.mxu0 0
  %117 = vmatprep.subr.bf16.mxu0 0
  %118 = vmatpush1.bf16.msra.mxu0 0
  %119 = vmatprep.subr.bf16.mxu0 0
  %120 = vmatpush1.bf16.msra.mxu0 0
  %121 = vmatprep.subr.bf16.mxu0 0
  %122 = vmatpush1.bf16.msra.mxu0 0
  %123 = vmatprep.subr.bf16.mxu0 0
  %124 = vmatpush1.bf16.msra.mxu0 0
  %125 = vmatprep.subr.bf16.mxu0 0
  %126 = vmatpush1.bf16.msra.mxu0 0
  %127 = vmatprep.subr.bf16.mxu0 0
  %128 = vmatpush1.bf16.msra.mxu0 0
  %129 = vmatprep.subr.bf16.mxu0 0
  %130 = vmatpush1.bf16.msra.mxu0 0
  %131 = vmatprep.subr.bf16.mxu0 0
  %132 = vmatpush1.bf16.msra.mxu0 0
  %133 = vmatprep.subr.bf16.mxu0 0
  %134 = vmatpush1.bf16.msra.mxu0 0
  %135 = vmatprep.mubr.bf16.mxu0 0
  %136 = vmatmul.mubr.bf16.gmra.mrb[0].mxu0 %v98
  %v137 = vpop.f32.mrb[0].mxu0
  %v138 = vadd.f32 %v92, %v137
  %v139 = vpop.f32.mrb[0].mxu0
  %v140 = vpop.f32.mrb[0].mxu0
  %v141 = vpop.f32.mrb[0].mxu0
  %142 = vdwg.mxu0
  %s143 = scalar_lea.vmem %s1, 8
  %v144 = vld [vmem:[%s143] sm:$0xf]
  %v146 = vsel %vm49, %v144, 0
  %v149 = vsel %vm53, %v44, 0
  %151 = vmatprep.subr.bf16.mxu0 0
  %152 = vmatpush1.bf16.msra.mxu0 %v149
  %153 = vmatprep.subr.bf16.mxu0 0
  %154 = vmatpush1.bf16.msra.mxu0 0
  %155 = vmatprep.subr.bf16.mxu0 0
  %156 = vmatpush1.bf16.msra.mxu0 0
  %157 = vmatprep.subr.bf16.mxu0 0
  %158 = vmatpush1.bf16.msra.mxu0 0
  %159 = vmatprep.subr.bf16.mxu0 0
  %160 = vmatpush1.bf16.msra.mxu0 0
  %161 = vmatprep.subr.bf16.mxu0 0
  %162 = vmatpush1.bf16.msra.mxu0 0
  %163 = vmatprep.subr.bf16.mxu0 0
  %164 = vmatpush1.bf16.msra.mxu0 0
  %165 = vmatprep.subr.bf16.mxu0 0
  %166 = vmatpush1.bf16.msra.mxu0 0
  %167 = vmatprep.subr.bf16.mxu0 0
  %168 = vmatpush1.bf16.msra.mxu0 0
  %169 = vmatprep.subr.bf16.mxu0 0
  %170 = vmatpush1.bf16.msra.mxu0 0
  %171 = vmatprep.subr.bf16.mxu0 0
  %172 = vmatpush1.bf16.msra.mxu0 0
  %173 = vmatprep.subr.bf16.mxu0 0
  %174 = vmatpush1.bf16.msra.mxu0 0
  %175 = vmatprep.subr.bf16.mxu0 0
  %176 = vmatpush1.bf16.msra.mxu0 0
  %177 = vmatprep.subr.bf16.mxu0 0
  %178 = vmatpush1.bf16.msra.mxu0 0
  %179 = vmatprep.subr.bf16.mxu0 0
  %180 = vmatpush1.bf16.msra.mxu0 0
  %181 = vmatprep.subr.bf16.mxu0 0
  %182 = vmatpush1.bf16.msra.mxu0 0
  %183 = vmatprep.mubr.bf16.mxu0 0
  %184 = vmatmul.mubr.bf16.gmra.mrb[0].mxu0 %v146
  %v185 = vpop.f32.mrb[0].mxu0
  %v186 = vadd.f32 0.0, %v185
  %v187 = vpop.f32.mrb[0].mxu0
  %v188 = vpop.f32.mrb[0].mxu0
  %v189 = vpop.f32.mrb[0].mxu0
  %190 = vdwg.mxu0
  %v191 = vadd.f32 %v138, %v186
  %v192 = vlaneseq
  %v193 = vshrl.u32 %v192, 7
  %v194 = vsub.s32 0, %v193
  %v195 = vrot.slane %v26, %v194
  %v196 = vmul.f32 %v191, %v195
  %197 = vadd.xlane.f32.xlu0 %v196
  %v198 = vpop.xlane.xlu0 %197
  %v199 = vmul.f32 %v196, %v196
  %200 = vadd.xlane.f32.xlu0 %v199
  %v201 = vpop.xlane.xlu0 %200
  %v202 = vmul.f32 %v198, 0.03125
  %v203 = vmul.f32 %v201, 0.03125
  %v204 = vmul.f32 %v202, %v202
  %v205 = vsub.f32 %v203, %v204
  %v206 = vmax.f32 %v205, 0.0
  %v207 = vadd.f32 %v206, 1e-05
  %v208 = vrsqrt.pop %v207
  %v209 = vmul.f32 %v28, %v208
  %211 = vset.pattern.permute.xlu0 0
  %212 = vperm.xlu0 %211, %v209
  %v213 = vpop.permute.xlu0 %212
  %v215 = vmul.f32 %v191, %v213
  %v216 = vmul.f32 %v202, %v209
  %218 = vrot.lane.b32.xlu0 %v216, 1
  %v219 = vpop.permute.xlu0 %218
  %v221 = vsub.f32 %v28, %v219
  %223 = vset.pattern.permute.xlu0 1
  %224 = vperm.xlu0 %223, %v221
  %v225 = vpop.permute.xlu0 %224
  %v227 = vadd.f32 %v215, %v225
  %v228 = vmax.f32 %v227, 0.0
  %229 = vrot.lane.b32.xlu0 %v228, 1
  %v230 = vpop.permute.xlu0 %229
  %v231 = vmul.f32 %v230, %v34
  %v232 = vpack.c.bf16 %v231, %v231
  %233 = vrot.lane.b32.xlu0 %v228, 127
  %v234 = vpop.permute.xlu0 %233
  %v235 = vmul.f32 %v234, %v42
  %v236 = vpack.c.bf16 %v235, %v235
  %s237 = scalar_lea.vmem %s1, 12
  %v238 = vld [vmem:[%s237] sm:$0xf]
  %s239 = scalar_lea.vmem %s1, 16
  %v240 = vld [vmem:[%s239] sm:$0xf]
  %v241 = vpack.c.bf16 %v228, %v228
  %v243 = vsel %vm49, %v240, 0
  %v246 = vsel %vm53, %v241, 0
  %248 = vmatprep.subr.bf16.mxu0 0
  %249 = vmatpush1.bf16.msra.mxu0 %v246
  %250 = vmatprep.subr.bf16.mxu0 0
  %251 = vmatpush1.bf16.msra.mxu0 0
  %252 = vmatprep.subr.bf16.mxu0 0
  %253 = vmatpush1.bf16.msra.mxu0 0
  %254 = vmatprep.subr.bf16.mxu0 0
  %255 = vmatpush1.bf16.msra.mxu0 0
  %256 = vmatprep.subr.bf16.mxu0 0
  %257 = vmatpush1.bf16.msra.mxu0 0
  %258 = vmatprep.subr.bf16.mxu0 0
  %259 = vmatpush1.bf16.msra.mxu0 0
  %260 = vmatprep.subr.bf16.mxu0 0
  %261 = vmatpush1.bf16.msra.mxu0 0
  %262 = vmatprep.subr.bf16.mxu0 0
  %263 = vmatpush1.bf16.msra.mxu0 0
  %264 = vmatprep.subr.bf16.mxu0 0
  %265 = vmatpush1.bf16.msra.mxu0 0
  %266 = vmatprep.subr.bf16.mxu0 0
  %267 = vmatpush1.bf16.msra.mxu0 0
  %268 = vmatprep.subr.bf16.mxu0 0
  %269 = vmatpush1.bf16.msra.mxu0 0
  %270 = vmatprep.subr.bf16.mxu0 0
  %271 = vmatpush1.bf16.msra.mxu0 0
  %272 = vmatprep.subr.bf16.mxu0 0
  %273 = vmatpush1.bf16.msra.mxu0 0
  %274 = vmatprep.subr.bf16.mxu0 0
  %275 = vmatpush1.bf16.msra.mxu0 0
  %276 = vmatprep.subr.bf16.mxu0 0
  %277 = vmatpush1.bf16.msra.mxu0 0
  %278 = vmatprep.subr.bf16.mxu0 0
  %279 = vmatpush1.bf16.msra.mxu0 0
  %280 = vmatprep.mubr.bf16.mxu0 0
  %281 = vmatmul.mubr.bf16.gmra.mrb[0].mxu0 %v243
  %v282 = vpop.f32.mrb[0].mxu0
  %v283 = vadd.f32 0.0, %v282
  %v284 = vpop.f32.mrb[0].mxu0
  %v285 = vpop.f32.mrb[0].mxu0
  %v286 = vpop.f32.mrb[0].mxu0
  %287 = vdwg.mxu0
  %v289 = vsel %vm49, %v238, 0
  %v292 = vsel %vm53, %v232, 0
  %294 = vmatprep.subr.bf16.mxu0 0
  %295 = vmatpush1.bf16.msra.mxu0 %v292
  %296 = vmatprep.subr.bf16.mxu0 0
  %297 = vmatpush1.bf16.msra.mxu0 0
  %298 = vmatprep.subr.bf16.mxu0 0
  %299 = vmatpush1.bf16.msra.mxu0 0
  %300 = vmatprep.subr.bf16.mxu0 0
  %301 = vmatpush1.bf16.msra.mxu0 0
  %302 = vmatprep.subr.bf16.mxu0 0
  %303 = vmatpush1.bf16.msra.mxu0 0
  %304 = vmatprep.subr.bf16.mxu0 0
  %305 = vmatpush1.bf16.msra.mxu0 0
  %306 = vmatprep.subr.bf16.mxu0 0
  %307 = vmatpush1.bf16.msra.mxu0 0
  %308 = vmatprep.subr.bf16.mxu0 0
  %309 = vmatpush1.bf16.msra.mxu0 0
  %310 = vmatprep.subr.bf16.mxu0 0
  %311 = vmatpush1.bf16.msra.mxu0 0
  %312 = vmatprep.subr.bf16.mxu0 0
  %313 = vmatpush1.bf16.msra.mxu0 0
  %314 = vmatprep.subr.bf16.mxu0 0
  %315 = vmatpush1.bf16.msra.mxu0 0
  %316 = vmatprep.subr.bf16.mxu0 0
  %317 = vmatpush1.bf16.msra.mxu0 0
  %318 = vmatprep.subr.bf16.mxu0 0
  %319 = vmatpush1.bf16.msra.mxu0 0
  %320 = vmatprep.subr.bf16.mxu0 0
  %321 = vmatpush1.bf16.msra.mxu0 0
  %322 = vmatprep.subr.bf16.mxu0 0
  %323 = vmatpush1.bf16.msra.mxu0 0
  %324 = vmatprep.subr.bf16.mxu0 0
  %325 = vmatpush1.bf16.msra.mxu0 0
  %326 = vmatprep.mubr.bf16.mxu0 0
  %327 = vmatmul.mubr.bf16.gmra.mrb[0].mxu0 %v289
  %v328 = vpop.f32.mrb[0].mxu0
  %v329 = vadd.f32 %v283, %v328
  %v330 = vpop.f32.mrb[0].mxu0
  %v331 = vpop.f32.mrb[0].mxu0
  %v332 = vpop.f32.mrb[0].mxu0
  %333 = vdwg.mxu0
  %s334 = scalar_lea.vmem %s1, 20
  %v335 = vld [vmem:[%s334] sm:$0xf]
  %v337 = vsel %vm49, %v335, 0
  %v340 = vsel %vm53, %v236, 0
  %342 = vmatprep.subr.bf16.mxu0 0
  %343 = vmatpush1.bf16.msra.mxu0 %v340
  %344 = vmatprep.subr.bf16.mxu0 0
  %345 = vmatpush1.bf16.msra.mxu0 0
  %346 = vmatprep.subr.bf16.mxu0 0
  %347 = vmatpush1.bf16.msra.mxu0 0
  %348 = vmatprep.subr.bf16.mxu0 0
  %349 = vmatpush1.bf16.msra.mxu0 0
  %350 = vmatprep.subr.bf16.mxu0 0
  %351 = vmatpush1.bf16.msra.mxu0 0
  %352 = vmatprep.subr.bf16.mxu0 0
  %353 = vmatpush1.bf16.msra.mxu0 0
  %354 = vmatprep.subr.bf16.mxu0 0
  %355 = vmatpush1.bf16.msra.mxu0 0
  %356 = vmatprep.subr.bf16.mxu0 0
  %357 = vmatpush1.bf16.msra.mxu0 0
  %358 = vmatprep.subr.bf16.mxu0 0
  %359 = vmatpush1.bf16.msra.mxu0 0
  %360 = vmatprep.subr.bf16.mxu0 0
  %361 = vmatpush1.bf16.msra.mxu0 0
  %362 = vmatprep.subr.bf16.mxu0 0
  %363 = vmatpush1.bf16.msra.mxu0 0
  %364 = vmatprep.subr.bf16.mxu0 0
  %365 = vmatpush1.bf16.msra.mxu0 0
  %366 = vmatprep.subr.bf16.mxu0 0
  %367 = vmatpush1.bf16.msra.mxu0 0
  %368 = vmatprep.subr.bf16.mxu0 0
  %369 = vmatpush1.bf16.msra.mxu0 0
  %370 = vmatprep.subr.bf16.mxu0 0
  %371 = vmatpush1.bf16.msra.mxu0 0
  %372 = vmatprep.subr.bf16.mxu0 0
  %373 = vmatpush1.bf16.msra.mxu0 0
  %374 = vmatprep.mubr.bf16.mxu0 0
  %375 = vmatmul.mubr.bf16.gmra.mrb[0].mxu0 %v337
  %v376 = vpop.f32.mrb[0].mxu0
  %v377 = vadd.f32 0.0, %v376
  %v378 = vpop.f32.mrb[0].mxu0
  %v379 = vpop.f32.mrb[0].mxu0
  %v380 = vpop.f32.mrb[0].mxu0
  %381 = vdwg.mxu0
  %v382 = vadd.f32 %v329, %v377
  %v383 = vmul.f32 %v382, %v195
  %384 = vadd.xlane.f32.xlu0 %v383
  %v385 = vpop.xlane.xlu0 %384
  %v386 = vmul.f32 %v383, %v383
  %387 = vadd.xlane.f32.xlu0 %v386
  %v388 = vpop.xlane.xlu0 %387
  %v389 = vmul.f32 %v385, 0.03125
  %v390 = vmul.f32 %v388, 0.03125
  %v391 = vmul.f32 %v389, %v389
  %v392 = vsub.f32 %v390, %v391
  %v393 = vmax.f32 %v392, 0.0
  %v394 = vadd.f32 %v393, 1e-05
  %v395 = vrsqrt.pop %v394
  %v396 = vmul.f32 %v28, %v395
  %398 = vset.pattern.permute.xlu0 2
  %399 = vperm.xlu0 %398, %v396
  %v400 = vpop.permute.xlu0 %399
  %v402 = vmul.f32 %v382, %v400
  %v403 = vmul.f32 %v389, %v396
  %405 = vrot.lane.b32.xlu0 %v403, 1
  %v406 = vpop.permute.xlu0 %405
  %v408 = vsub.f32 %v28, %v406
  %410 = vset.pattern.permute.xlu0 3
  %411 = vperm.xlu0 %410, %v408
  %v412 = vpop.permute.xlu0 %411
  %v414 = vadd.f32 %v402, %v412
  %v415 = vadd.f32 %v414, %v27
  %v416 = vmax.f32 %v415, 0.0
  %v417 = vmul.f32 %v416, %v195
  %s418 = scalar_lea.vmem %s2, 8
  %v419 = vld [vmem:[%s418] sm:$0xff]
  %420 = vrot.lane.b32.xlu0 %v417, 1
  %v421 = vpop.permute.xlu0 %420
  %v422 = vmul.f32 %v421, %v34
  %v423 = vpack.c.bf16 %v422, %v422
  %424 = vrot.lane.b32.xlu0 %v417, 127
  %v425 = vpop.permute.xlu0 %424
  %v426 = vmul.f32 %v425, %v42
  %v427 = vpack.c.bf16 %v426, %v426
  %s428 = scalar_lea.vmem %s1, 24
  %v429 = vld [vmem:[%s428] sm:$0xf]
  %s430 = scalar_lea.vmem %s1, 28
  %v431 = vld [vmem:[%s430] sm:$0xf]
  %v432 = vpack.c.bf16 %v417, %v417
  %v434 = vsel %vm49, %v431, 0
  %v437 = vsel %vm53, %v432, 0
  %439 = vmatprep.subr.bf16.mxu0 0
  %440 = vmatpush1.bf16.msra.mxu0 %v437
  %441 = vmatprep.subr.bf16.mxu0 0
  %442 = vmatpush1.bf16.msra.mxu0 0
  %443 = vmatprep.subr.bf16.mxu0 0
  %444 = vmatpush1.bf16.msra.mxu0 0
  %445 = vmatprep.subr.bf16.mxu0 0
  %446 = vmatpush1.bf16.msra.mxu0 0
  %447 = vmatprep.subr.bf16.mxu0 0
  %448 = vmatpush1.bf16.msra.mxu0 0
  %449 = vmatprep.subr.bf16.mxu0 0
  %450 = vmatpush1.bf16.msra.mxu0 0
  %451 = vmatprep.subr.bf16.mxu0 0
  %452 = vmatpush1.bf16.msra.mxu0 0
  %453 = vmatprep.subr.bf16.mxu0 0
  %454 = vmatpush1.bf16.msra.mxu0 0
  %455 = vmatprep.subr.bf16.mxu0 0
  %456 = vmatpush1.bf16.msra.mxu0 0
  %457 = vmatprep.subr.bf16.mxu0 0
  %458 = vmatpush1.bf16.msra.mxu0 0
  %459 = vmatprep.subr.bf16.mxu0 0
  %460 = vmatpush1.bf16.msra.mxu0 0
  %461 = vmatprep.subr.bf16.mxu0 0
  %462 = vmatpush1.bf16.msra.mxu0 0
  %463 = vmatprep.subr.bf16.mxu0 0
  %464 = vmatpush1.bf16.msra.mxu0 0
  %465 = vmatprep.subr.bf16.mxu0 0
  %466 = vmatpush1.bf16.msra.mxu0 0
  %467 = vmatprep.subr.bf16.mxu0 0
  %468 = vmatpush1.bf16.msra.mxu0 0
  %469 = vmatprep.subr.bf16.mxu0 0
  %470 = vmatpush1.bf16.msra.mxu0 0
  %471 = vmatprep.mubr.bf16.mxu0 0
  %472 = vmatmul.mubr.bf16.gmra.mrb[0].mxu0 %v434
  %v473 = vpop.f32.mrb[0].mxu0
  %v474 = vadd.f32 0.0, %v473
  %v475 = vpop.f32.mrb[0].mxu0
  %v476 = vpop.f32.mrb[0].mxu0
  %v477 = vpop.f32.mrb[0].mxu0
  %478 = vdwg.mxu0
  %v480 = vsel %vm49, %v429, 0
  %v483 = vsel %vm53, %v423, 0
  %485 = vmatprep.subr.bf16.mxu0 0
  %486 = vmatpush1.bf16.msra.mxu0 %v483
  %487 = vmatprep.subr.bf16.mxu0 0
  %488 = vmatpush1.bf16.msra.mxu0 0
  %489 = vmatprep.subr.bf16.mxu0 0
  %490 = vmatpush1.bf16.msra.mxu0 0
  %491 = vmatprep.subr.bf16.mxu0 0
  %492 = vmatpush1.bf16.msra.mxu0 0
  %493 = vmatprep.subr.bf16.mxu0 0
  %494 = vmatpush1.bf16.msra.mxu0 0
  %495 = vmatprep.subr.bf16.mxu0 0
  %496 = vmatpush1.bf16.msra.mxu0 0
  %497 = vmatprep.subr.bf16.mxu0 0
  %498 = vmatpush1.bf16.msra.mxu0 0
  %499 = vmatprep.subr.bf16.mxu0 0
  %500 = vmatpush1.bf16.msra.mxu0 0
  %501 = vmatprep.subr.bf16.mxu0 0
  %502 = vmatpush1.bf16.msra.mxu0 0
  %503 = vmatprep.subr.bf16.mxu0 0
  %504 = vmatpush1.bf16.msra.mxu0 0
  %505 = vmatprep.subr.bf16.mxu0 0
  %506 = vmatpush1.bf16.msra.mxu0 0
  %507 = vmatprep.subr.bf16.mxu0 0
  %508 = vmatpush1.bf16.msra.mxu0 0
  %509 = vmatprep.subr.bf16.mxu0 0
  %510 = vmatpush1.bf16.msra.mxu0 0
  %511 = vmatprep.subr.bf16.mxu0 0
  %512 = vmatpush1.bf16.msra.mxu0 0
  %513 = vmatprep.subr.bf16.mxu0 0
  %514 = vmatpush1.bf16.msra.mxu0 0
  %515 = vmatprep.subr.bf16.mxu0 0
  %516 = vmatpush1.bf16.msra.mxu0 0
  %517 = vmatprep.mubr.bf16.mxu0 0
  %518 = vmatmul.mubr.bf16.gmra.mrb[0].mxu0 %v480
  %v519 = vpop.f32.mrb[0].mxu0
  %v520 = vadd.f32 %v474, %v519
  %v521 = vpop.f32.mrb[0].mxu0
  %v522 = vpop.f32.mrb[0].mxu0
  %v523 = vpop.f32.mrb[0].mxu0
  %524 = vdwg.mxu0
  %s525 = scalar_lea.vmem %s1, 32
  %v526 = vld [vmem:[%s525] sm:$0xf]
  %v528 = vsel %vm49, %v526, 0
  %v531 = vsel %vm53, %v427, 0
  %533 = vmatprep.subr.bf16.mxu0 0
  %534 = vmatpush1.bf16.msra.mxu0 %v531
  %535 = vmatprep.subr.bf16.mxu0 0
  %536 = vmatpush1.bf16.msra.mxu0 0
  %537 = vmatprep.subr.bf16.mxu0 0
  %538 = vmatpush1.bf16.msra.mxu0 0
  %539 = vmatprep.subr.bf16.mxu0 0
  %540 = vmatpush1.bf16.msra.mxu0 0
  %541 = vmatprep.subr.bf16.mxu0 0
  %542 = vmatpush1.bf16.msra.mxu0 0
  %543 = vmatprep.subr.bf16.mxu0 0
  %544 = vmatpush1.bf16.msra.mxu0 0
  %545 = vmatprep.subr.bf16.mxu0 0
  %546 = vmatpush1.bf16.msra.mxu0 0
  %547 = vmatprep.subr.bf16.mxu0 0
  %548 = vmatpush1.bf16.msra.mxu0 0
  %549 = vmatprep.subr.bf16.mxu0 0
  %550 = vmatpush1.bf16.msra.mxu0 0
  %551 = vmatprep.subr.bf16.mxu0 0
  %552 = vmatpush1.bf16.msra.mxu0 0
  %553 = vmatprep.subr.bf16.mxu0 0
  %554 = vmatpush1.bf16.msra.mxu0 0
  %555 = vmatprep.subr.bf16.mxu0 0
  %556 = vmatpush1.bf16.msra.mxu0 0
  %557 = vmatprep.subr.bf16.mxu0 0
  %558 = vmatpush1.bf16.msra.mxu0 0
  %559 = vmatprep.subr.bf16.mxu0 0
  %560 = vmatpush1.bf16.msra.mxu0 0
  %561 = vmatprep.subr.bf16.mxu0 0
  %562 = vmatpush1.bf16.msra.mxu0 0
  %563 = vmatprep.subr.bf16.mxu0 0
  %564 = vmatpush1.bf16.msra.mxu0 0
  %565 = vmatprep.mubr.bf16.mxu0 0
  %566 = vmatmul.mubr.bf16.gmra.mrb[0].mxu0 %v528
  %v567 = vpop.f32.mrb[0].mxu0
  %v568 = vadd.f32 0.0, %v567
  %v569 = vpop.f32.mrb[0].mxu0
  %v570 = vpop.f32.mrb[0].mxu0
  %v571 = vpop.f32.mrb[0].mxu0
  %572 = vdwg.mxu0
  %v573 = vadd.f32 %v520, %v568
  %v574 = vmul.f32 %v573, %v195
  %575 = vadd.xlane.f32.xlu0 %v574
  %v576 = vpop.xlane.xlu0 %575
  %v577 = vmul.f32 %v574, %v574
  %578 = vadd.xlane.f32.xlu0 %v577
  %v579 = vpop.xlane.xlu0 %578
  %v580 = vmul.f32 %v576, 0.03125
  %v581 = vmul.f32 %v579, 0.03125
  %v582 = vmul.f32 %v580, %v580
  %v583 = vsub.f32 %v581, %v582
  %v584 = vmax.f32 %v583, 0.0
  %v585 = vadd.f32 %v584, 1e-05
  %v586 = vrsqrt.pop %v585
  %v587 = vmul.f32 %v419, %v586
  %589 = vset.pattern.permute.xlu0 0
  %590 = vperm.xlu0 %589, %v587
  %v591 = vpop.permute.xlu0 %590
  %v593 = vmul.f32 %v573, %v591
  %v594 = vmul.f32 %v580, %v587
  %596 = vrot.lane.b32.xlu0 %v594, 1
  %v597 = vpop.permute.xlu0 %596
  %v599 = vsub.f32 %v419, %v597
  %601 = vset.pattern.permute.xlu0 1
  %602 = vperm.xlu0 %601, %v599
  %v603 = vpop.permute.xlu0 %602
  %v605 = vadd.f32 %v593, %v603
  %v606 = vmax.f32 %v605, 0.0
  %607 = vrot.lane.b32.xlu0 %v606, 1
  %v608 = vpop.permute.xlu0 %607
  %v609 = vmul.f32 %v608, %v34
  %v610 = vpack.c.bf16 %v609, %v609
  %611 = vrot.lane.b32.xlu0 %v606, 127
  %v612 = vpop.permute.xlu0 %611
  %v613 = vmul.f32 %v612, %v42
  %v614 = vpack.c.bf16 %v613, %v613
  %s615 = scalar_lea.vmem %s1, 36
  %v616 = vld [vmem:[%s615] sm:$0xf]
  %s617 = scalar_lea.vmem %s1, 40
  %v618 = vld [vmem:[%s617] sm:$0xf]
  %v619 = vpack.c.bf16 %v606, %v606
  %v621 = vsel %vm49, %v618, 0
  %v624 = vsel %vm53, %v619, 0
  %626 = vmatprep.subr.bf16.mxu0 0
  %627 = vmatpush1.bf16.msra.mxu0 %v624
  %628 = vmatprep.subr.bf16.mxu0 0
  %629 = vmatpush1.bf16.msra.mxu0 0
  %630 = vmatprep.subr.bf16.mxu0 0
  %631 = vmatpush1.bf16.msra.mxu0 0
  %632 = vmatprep.subr.bf16.mxu0 0
  %633 = vmatpush1.bf16.msra.mxu0 0
  %634 = vmatprep.subr.bf16.mxu0 0
  %635 = vmatpush1.bf16.msra.mxu0 0
  %636 = vmatprep.subr.bf16.mxu0 0
  %637 = vmatpush1.bf16.msra.mxu0 0
  %638 = vmatprep.subr.bf16.mxu0 0
  %639 = vmatpush1.bf16.msra.mxu0 0
  %640 = vmatprep.subr.bf16.mxu0 0
  %641 = vmatpush1.bf16.msra.mxu0 0
  %642 = vmatprep.subr.bf16.mxu0 0
  %643 = vmatpush1.bf16.msra.mxu0 0
  %644 = vmatprep.subr.bf16.mxu0 0
  %645 = vmatpush1.bf16.msra.mxu0 0
  %646 = vmatprep.subr.bf16.mxu0 0
  %647 = vmatpush1.bf16.msra.mxu0 0
  %648 = vmatprep.subr.bf16.mxu0 0
  %649 = vmatpush1.bf16.msra.mxu0 0
  %650 = vmatprep.subr.bf16.mxu0 0
  %651 = vmatpush1.bf16.msra.mxu0 0
  %652 = vmatprep.subr.bf16.mxu0 0
  %653 = vmatpush1.bf16.msra.mxu0 0
  %654 = vmatprep.subr.bf16.mxu0 0
  %655 = vmatpush1.bf16.msra.mxu0 0
  %656 = vmatprep.subr.bf16.mxu0 0
  %657 = vmatpush1.bf16.msra.mxu0 0
  %658 = vmatprep.mubr.bf16.mxu0 0
  %659 = vmatmul.mubr.bf16.gmra.mrb[0].mxu0 %v621
  %v660 = vpop.f32.mrb[0].mxu0
  %v661 = vadd.f32 0.0, %v660
  %v662 = vpop.f32.mrb[0].mxu0
  %v663 = vpop.f32.mrb[0].mxu0
  %v664 = vpop.f32.mrb[0].mxu0
  %665 = vdwg.mxu0
  %v667 = vsel %vm49, %v616, 0
  %v670 = vsel %vm53, %v610, 0
  %672 = vmatprep.subr.bf16.mxu0 0
  %673 = vmatpush1.bf16.msra.mxu0 %v670
  %674 = vmatprep.subr.bf16.mxu0 0
  %675 = vmatpush1.bf16.msra.mxu0 0
  %676 = vmatprep.subr.bf16.mxu0 0
  %677 = vmatpush1.bf16.msra.mxu0 0
  %678 = vmatprep.subr.bf16.mxu0 0
  %679 = vmatpush1.bf16.msra.mxu0 0
  %680 = vmatprep.subr.bf16.mxu0 0
  %681 = vmatpush1.bf16.msra.mxu0 0
  %682 = vmatprep.subr.bf16.mxu0 0
  %683 = vmatpush1.bf16.msra.mxu0 0
  %684 = vmatprep.subr.bf16.mxu0 0
  %685 = vmatpush1.bf16.msra.mxu0 0
  %686 = vmatprep.subr.bf16.mxu0 0
  %687 = vmatpush1.bf16.msra.mxu0 0
  %688 = vmatprep.subr.bf16.mxu0 0
  %689 = vmatpush1.bf16.msra.mxu0 0
  %690 = vmatprep.subr.bf16.mxu0 0
  %691 = vmatpush1.bf16.msra.mxu0 0
  %692 = vmatprep.subr.bf16.mxu0 0
  %693 = vmatpush1.bf16.msra.mxu0 0
  %694 = vmatprep.subr.bf16.mxu0 0
  %695 = vmatpush1.bf16.msra.mxu0 0
  %696 = vmatprep.subr.bf16.mxu0 0
  %697 = vmatpush1.bf16.msra.mxu0 0
  %698 = vmatprep.subr.bf16.mxu0 0
  %699 = vmatpush1.bf16.msra.mxu0 0
  %700 = vmatprep.subr.bf16.mxu0 0
  %701 = vmatpush1.bf16.msra.mxu0 0
  %702 = vmatprep.subr.bf16.mxu0 0
  %703 = vmatpush1.bf16.msra.mxu0 0
  %704 = vmatprep.mubr.bf16.mxu0 0
  %705 = vmatmul.mubr.bf16.gmra.mrb[0].mxu0 %v667
  %v706 = vpop.f32.mrb[0].mxu0
  %v707 = vadd.f32 %v661, %v706
  %v708 = vpop.f32.mrb[0].mxu0
  %v709 = vpop.f32.mrb[0].mxu0
  %v710 = vpop.f32.mrb[0].mxu0
  %711 = vdwg.mxu0
  %s712 = scalar_lea.vmem %s1, 44
  %v713 = vld [vmem:[%s712] sm:$0xf]
  %v715 = vsel %vm49, %v713, 0
  %v718 = vsel %vm53, %v614, 0
  %720 = vmatprep.subr.bf16.mxu0 0
  %721 = vmatpush1.bf16.msra.mxu0 %v718
  %722 = vmatprep.subr.bf16.mxu0 0
  %723 = vmatpush1.bf16.msra.mxu0 0
  %724 = vmatprep.subr.bf16.mxu0 0
  %725 = vmatpush1.bf16.msra.mxu0 0
  %726 = vmatprep.subr.bf16.mxu0 0
  %727 = vmatpush1.bf16.msra.mxu0 0
  %728 = vmatprep.subr.bf16.mxu0 0
  %729 = vmatpush1.bf16.msra.mxu0 0
  %730 = vmatprep.subr.bf16.mxu0 0
  %731 = vmatpush1.bf16.msra.mxu0 0
  %732 = vmatprep.subr.bf16.mxu0 0
  %733 = vmatpush1.bf16.msra.mxu0 0
  %734 = vmatprep.subr.bf16.mxu0 0
  %735 = vmatpush1.bf16.msra.mxu0 0
  %736 = vmatprep.subr.bf16.mxu0 0
  %737 = vmatpush1.bf16.msra.mxu0 0
  %738 = vmatprep.subr.bf16.mxu0 0
  %739 = vmatpush1.bf16.msra.mxu0 0
  %740 = vmatprep.subr.bf16.mxu0 0
  %741 = vmatpush1.bf16.msra.mxu0 0
  %742 = vmatprep.subr.bf16.mxu0 0
  %743 = vmatpush1.bf16.msra.mxu0 0
  %744 = vmatprep.subr.bf16.mxu0 0
  %745 = vmatpush1.bf16.msra.mxu0 0
  %746 = vmatprep.subr.bf16.mxu0 0
  %747 = vmatpush1.bf16.msra.mxu0 0
  %748 = vmatprep.subr.bf16.mxu0 0
  %749 = vmatpush1.bf16.msra.mxu0 0
  %750 = vmatprep.subr.bf16.mxu0 0
  %751 = vmatpush1.bf16.msra.mxu0 0
  %752 = vmatprep.mubr.bf16.mxu0 0
  %753 = vmatmul.mubr.bf16.gmra.mrb[0].mxu0 %v715
  %v754 = vpop.f32.mrb[0].mxu0
  %v755 = vadd.f32 0.0, %v754
  %v756 = vpop.f32.mrb[0].mxu0
  %v757 = vpop.f32.mrb[0].mxu0
  %v758 = vpop.f32.mrb[0].mxu0
  %759 = vdwg.mxu0
  %v760 = vadd.f32 %v707, %v755
  %v761 = vmul.f32 %v760, %v195
  %762 = vadd.xlane.f32.xlu0 %v761
  %v763 = vpop.xlane.xlu0 %762
  %v764 = vmul.f32 %v761, %v761
  %765 = vadd.xlane.f32.xlu0 %v764
  %v766 = vpop.xlane.xlu0 %765
  %v767 = vmul.f32 %v763, 0.03125
  %v768 = vmul.f32 %v766, 0.03125
  %v769 = vmul.f32 %v767, %v767
  %v770 = vsub.f32 %v768, %v769
  %v771 = vmax.f32 %v770, 0.0
  %v772 = vadd.f32 %v771, 1e-05
  %v773 = vrsqrt.pop %v772
  %v774 = vmul.f32 %v419, %v773
  %776 = vset.pattern.permute.xlu0 2
  %777 = vperm.xlu0 %776, %v774
  %v778 = vpop.permute.xlu0 %777
  %v780 = vmul.f32 %v760, %v778
  %v781 = vmul.f32 %v767, %v774
  %783 = vrot.lane.b32.xlu0 %v781, 1
  %v784 = vpop.permute.xlu0 %783
  %v786 = vsub.f32 %v419, %v784
  %788 = vset.pattern.permute.xlu0 3
  %789 = vperm.xlu0 %788, %v786
  %v790 = vpop.permute.xlu0 %789
  %v792 = vadd.f32 %v780, %v790
  %v793 = vadd.f32 %v792, %v417
  %v794 = vmax.f32 %v793, 0.0
  %v795 = vmul.f32 %v794, %v195
  %796 = vst [vmem:[%s4] sm:$0xff] %v795
  // Predicated region
  $region22: #{res_encoder_forward.3} parent=0 // pred_check
    _
  $region23: #{res_encoder_forward.3} parent=0 // pred_check_branch
    %798 = sbr.rel (0) target = $region25
  $region24: #{res_encoder_forward.3} parent=0 // pred_region
    _
  $region25: #{res_encoder_forward.3} parent=0 // pred_fallthru
    _
  // Predicated region
  $region26: #{res_encoder_forward.3} parent=0 // pred_check
    _
  $region27: #{res_encoder_forward.3} parent=0 // pred_check_branch
    %800 = sbr.rel (0) target = $region29
  $region28: #{res_encoder_forward.3} parent=0 // pred_region
    _
  $region29: #{res_encoder_forward.3} parent=0 // pred_fallthru
    _

</llo_original>
